<compile_context>
chip_gen: v6e
topology: v6e:2x2x1
jax: 0.10.0
libtpu: 0.0.40
codegen_flags: <defaults>
</compile_context>

<pallas_src>
import jax
import jax.numpy as jnp
from jax import lax
from jax.experimental import pallas as pl
from jax.experimental.pallas import tpu as pltpu

INPUT = 51
HIDDEN = 100
OUT = 2

# Lane/sublane-aligned padded sizes.
IN_PAD = 64          # 51  -> 64
H_PAD = 128          # 100 -> 128
G_PAD = 4 * H_PAD    # 512 gate lanes


def _pad_gate_cols(w):
    """(rows, 4*HIDDEN) -> (rows, 4*H_PAD); zero-pad each gate block 100->128."""
    r = w.shape[0]
    w4 = w.reshape(r, 4, HIDDEN)
    w4 = jnp.pad(w4, ((0, 0), (0, 0), (0, H_PAD - HIDDEN)))
    return w4.reshape(r, G_PAD)


def char_rnn_forward(x, params, *, tt=64):
    """x: (T, B, 51) float32.  Returns (B, 2) float32 == final(lstm(x)[0][-1])."""
    w_ih, w_hh, b_ih, b_hh, w_fin, b_fin = params
    T, B, I = x.shape
    assert I == INPUT

    # ---- static tiling decisions -------------------------------------------
    Bp = max(8, ((B + 7) // 8) * 8)      # pad batch to a full sublane group
    tt = max(1, min(tt, T))              # timesteps per grid step
    nblocks = -(-T // tt)
    T_pad = nblocks * tt
    needs_mask = (T_pad != T)
    unroll = True if tt <= 16 else 8

    # ---- host-side weight prep (zero padding keeps the math exact) ----------
    w_ih_t = _pad_gate_cols(jnp.asarray(w_ih, jnp.float32).T)        # (51, 512)
    w_ih_t = jnp.pad(w_ih_t, ((0, IN_PAD - INPUT), (0, 0)))          # (64, 512)
    w_hh_t = _pad_gate_cols(jnp.asarray(w_hh, jnp.float32).T)        # (100, 512)
    w_hh_t = jnp.pad(w_hh_t, ((0, H_PAD - HIDDEN), (0, 0)))          # (128, 512)
    b_comb = _pad_gate_cols(
        (jnp.asarray(b_ih, jnp.float32)
         + jnp.asarray(b_hh, jnp.float32))[None, :])                 # (1, 512)
    w_fin_t = jnp.pad(jnp.asarray(w_fin, jnp.float32).T,
                      ((0, H_PAD - HIDDEN), (0, 0)))                 # (128, 2)
    b_fin_r = jnp.asarray(b_fin, jnp.float32)[None, :]               # (1, 2)

    # Zero-pad x in time / batch / features, then group each time block into
    # one lane-dense 2-D slab of tt*Bp rows (row t*Bp + b == timestep t, batch b).
    x_p = jnp.zeros((T_pad, Bp, IN_PAD), jnp.float32)
    x_p = x_p.at[:T, :B, :INPUT].set(jnp.asarray(x, jnp.float32))
    x_blk = x_p.reshape(nblocks, tt * Bp, IN_PAD)

    def kernel(x_ref, w_ih_ref, w_hh_ref, b_ref, w_fin_ref, b_fin_ref,
               out_ref, h_sc, c_sc, pre_sc):
        tb = pl.program_id(0)

        @pl.when(tb == 0)
        def _():
            h_sc[...] = jnp.zeros_like(h_sc)
            c_sc[...] = jnp.zeros_like(c_sc)

        # Hoisted input projection + bias for the whole time block:
        # one (tt*Bp, 64) @ (64, 512) matmul, off the serial critical path.
        pre_sc[...] = (jnp.dot(x_ref[...], w_ih_ref[...],
                               preferred_element_type=jnp.float32)
                       + b_ref[...])

        def step(t, carry):
            h, c = carry
            row = pl.multiple_of(t * Bp, Bp)
            gates = (pre_sc[pl.ds(row, Bp), :]
                     + jnp.dot(h, w_hh_ref[...],
                               preferred_element_type=jnp.float32))
            # 128-lane aligned gate slices, PyTorch gate order [i, f, g, o].
            i_g = jax.nn.sigmoid(gates[:, 0 * H_PAD:1 * H_PAD])
            f_g = jax.nn.sigmoid(gates[:, 1 * H_PAD:2 * H_PAD])
            g_g = jnp.tanh(gates[:, 2 * H_PAD:3 * H_PAD])
            o_g = jax.nn.sigmoid(gates[:, 3 * H_PAD:4 * H_PAD])
            c_new = f_g * c + i_g * g_g
            h_new = o_g * jnp.tanh(c_new)
            if needs_mask:
                # Timesteps past the real sequence end leave the state alone.
                m = (tb * tt + t < T).astype(jnp.float32)
                h_new = h + m * (h_new - h)
                c_new = c + m * (c_new - c)
            return (h_new, c_new)

        h_fin, c_fin = lax.fori_loop(0, tt, step, (h_sc[...], c_sc[...]),
                                     unroll=unroll)
        h_sc[...] = h_fin
        c_sc[...] = c_fin

        @pl.when(tb == pl.num_programs(0) - 1)
        def _():
            out_ref[...] = (
                jnp.dot(h_fin, w_fin_ref[...],
                        preferred_element_type=jnp.float32)
                + b_fin_ref[...]).astype(out_ref.dtype)

    out_p = pl.pallas_call(
        kernel,
        out_shape=jax.ShapeDtypeStruct((Bp, OUT), jnp.float32),
        grid_spec=pltpu.PrefetchScalarGridSpec(
            num_scalar_prefetch=0,
            grid=(nblocks,),
            in_specs=[
                pl.BlockSpec((pl.Squeezed(), tt * Bp, IN_PAD),
                             lambda tb: (tb, 0, 0)),
                pl.BlockSpec((IN_PAD, G_PAD), lambda tb: (0, 0)),
                pl.BlockSpec((H_PAD, G_PAD), lambda tb: (0, 0)),
                pl.BlockSpec((1, G_PAD), lambda tb: (0, 0)),
                pl.BlockSpec((H_PAD, OUT), lambda tb: (0, 0)),
                pl.BlockSpec((1, OUT), lambda tb: (0, 0)),
            ],
            out_specs=pl.BlockSpec((Bp, OUT), lambda tb: (0, 0)),
            scratch_shapes=[
                pltpu.VMEM((Bp, H_PAD), jnp.float32),        # h state
                pltpu.VMEM((Bp, H_PAD), jnp.float32),        # c state
                pltpu.VMEM((tt * Bp, G_PAD), jnp.float32),   # pre-gates block
            ],
        ),
        compiler_params=pltpu.CompilerParams(
            dimension_semantics=("arbitrary",),   # recurrence is serial over T
        ),
    )(x_blk, w_ih_t, w_hh_t, b_comb, w_fin_t, b_fin_r)

    return out_p[:B]


def ref_forward(x, params):
    """Pure-JAX reference matching torch.nn.LSTM + Linear semantics."""
    w_ih, w_hh, b_ih, b_hh, w_fin, b_fin = params
    B = x.shape[1]
    h0 = jnp.zeros((B, HIDDEN), jnp.float32)
    c0 = jnp.zeros((B, HIDDEN), jnp.float32)

    def step(carry, x_t):
        h, c = carry
        gates = x_t @ w_ih.T + h @ w_hh.T + b_ih + b_hh
        i = jax.nn.sigmoid(gates[:, 0 * HIDDEN:1 * HIDDEN])
        f = jax.nn.sigmoid(gates[:, 1 * HIDDEN:2 * HIDDEN])
        g = jnp.tanh(gates[:, 2 * HIDDEN:3 * HIDDEN])
        o = jax.nn.sigmoid(gates[:, 3 * HIDDEN:4 * HIDDEN])
        c = f * c + i * g
        h = o * jnp.tanh(c)
        return (h, c), None

    (h, _), _ = jax.lax.scan(step, (h0, c0), x)
    return h @ w_fin.T + b_fin


def init_params(key):
    k = 1.0 / jnp.sqrt(HIDDEN)
    keys = jax.random.split(key, 6)
    w_ih = jax.random.uniform(keys[0], (4 * HIDDEN, INPUT), jnp.float32, -k, k)
    w_hh = jax.random.uniform(keys[1], (4 * HIDDEN, HIDDEN), jnp.float32, -k, k)
    b_ih = jax.random.uniform(keys[2], (4 * HIDDEN,), jnp.float32, -k, k)
    b_hh = jax.random.uniform(keys[3], (4 * HIDDEN,), jnp.float32, -k, k)
    w_fin = jax.random.uniform(keys[4], (OUT, HIDDEN), jnp.float32, -k, k)
    b_fin = jax.random.uniform(keys[5], (OUT,), jnp.float32, -k, k)
    return (w_ih, w_hh, b_ih, b_hh, w_fin, b_fin)


if __name__ == "__main__":
    key = jax.random.PRNGKey(0)
    pkey, xkey, xkey2 = jax.random.split(key, 3)
    params = init_params(pkey)

    # Main check: T divisible by the time block (2 grid steps -> exercises
    # h/c state carried across grid iterations).
    T, B = 8, 2
    x = jax.random.normal(xkey, (T, B, INPUT), jnp.float32)
    out = jax.block_until_ready(char_rnn_forward(x, params, tt=4))
    expected = ref_forward(x, params)
    assert out.shape == (B, OUT)
    assert jnp.allclose(out, expected, atol=1e-4, rtol=1e-4), (
        f"mismatch: max abs err {jnp.max(jnp.abs(out - expected))}")

    # Ragged-T check: exercises the padded-timestep mask path.
    T2 = 11
    x2 = jax.random.normal(xkey2, (T2, B, INPUT), jnp.float32)
    out2 = jax.block_until_ready(char_rnn_forward(x2, params, tt=4))
    expected2 = ref_forward(x2, params)
    assert jnp.allclose(out2, expected2, atol=1e-4, rtol=1e-4), (
        f"mismatch (ragged): max abs err {jnp.max(jnp.abs(out2 - expected2))}")

    print("KERNEL_OK")
</pallas_src>

<mosaic_0001>
module attributes {stable_mosaic.version = 11 : i64} {
  func.func @kernel(%arg0: i32, %arg1: memref<1x32x64xf32, #tpu.memory_space<vmem>>, %arg2: memref<64x512xf32, #tpu.memory_space<vmem>>, %arg3: memref<128x512xf32, #tpu.memory_space<vmem>>, %arg4: memref<1x512xf32, #tpu.memory_space<vmem>>, %arg5: memref<128x2xf32, #tpu.memory_space<vmem>>, %arg6: memref<1x2xf32, #tpu.memory_space<vmem>>, %arg7: memref<8x2xf32, #tpu.memory_space<vmem>>, %arg8: memref<8x128xf32, #tpu.memory_space<vmem>>, %arg9: memref<8x128xf32, #tpu.memory_space<vmem>>, %arg10: memref<32x512xf32, #tpu.memory_space<vmem>>) attributes {dimension_semantics = [#tpu.dimension_semantics<arbitrary>], iteration_bounds = array<i64: 2>, scalar_prefetch = 0 : i64, scratch_operands = 3 : i64, tpu.core_type = #tpu.core_type<tc>, window_params = [{transform_indices = @transform_0, window_bounds = array<i64: 1, 32, 64>}, {pipeline_mode = #tpu.pipeline_mode<synchronous>, transform_indices = @transform_1, window_bounds = array<i64: 64, 512>}, {pipeline_mode = #tpu.pipeline_mode<synchronous>, transform_indices = @transform_2, window_bounds = array<i64: 128, 512>}, {pipeline_mode = #tpu.pipeline_mode<synchronous>, transform_indices = @transform_3, window_bounds = array<i64: 1, 512>}, {pipeline_mode = #tpu.pipeline_mode<synchronous>, transform_indices = @transform_4, window_bounds = array<i64: 128, 2>}, {pipeline_mode = #tpu.pipeline_mode<synchronous>, transform_indices = @transform_5, window_bounds = array<i64: 1, 2>}, {pipeline_mode = #tpu.pipeline_mode<synchronous>, transform_indices = @transform_6, window_bounds = array<i64: 8, 2>}]} {
    %c0_i32 = arith.constant 0 : i32
    %0 = arith.cmpi eq, %arg0, %c0_i32 : i32
    %1 = arith.extui %0 : i1 to i32
    %c0_i32_0 = arith.constant 0 : i32
    %2 = arith.cmpi ne, %1, %c0_i32_0 : i32
    scf.if %2 {
      %cst_51 = arith.constant 0.000000e+00 : f32
      %146 = vector.broadcast %cst_51 : f32 to vector<8x128xf32>
      %c0_52 = arith.constant 0 : index
      %c0_53 = arith.constant 0 : index
      %147 = vector.load %arg8[%c0_52, %c0_53] : memref<8x128xf32, #tpu.memory_space<vmem>>, vector<8x128xf32>
      tpu.vector_store %arg8[%c0_52, %c0_53], %146 {strides = array<i32>} : memref<8x128xf32, #tpu.memory_space<vmem>>, vector<8x128xf32>,
      %cst_54 = arith.constant 0.000000e+00 : f32
      %148 = vector.broadcast %cst_54 : f32 to vector<8x128xf32>
      %c0_55 = arith.constant 0 : index
      %c0_56 = arith.constant 0 : index
      %149 = vector.load %arg9[%c0_55, %c0_56] : memref<8x128xf32, #tpu.memory_space<vmem>>, vector<8x128xf32>
      tpu.vector_store %arg9[%c0_55, %c0_56], %148 {strides = array<i32>} : memref<8x128xf32, #tpu.memory_space<vmem>>, vector<8x128xf32>,
    } else {
    }
    %c0 = arith.constant 0 : index
    %c0_1 = arith.constant 0 : index
    %c0_2 = arith.constant 0 : index
    %3 = vector.load %arg1[%c0, %c0_1, %c0_2] : memref<1x32x64xf32, #tpu.memory_space<vmem>>, vector<1x32x64xf32>
    %4 = vector.shape_cast %3 : vector<1x32x64xf32> to vector<32x64xf32>
    %c0_3 = arith.constant 0 : index
    %c0_4 = arith.constant 0 : index
    %5 = vector.load %arg2[%c0_3, %c0_4] : memref<64x512xf32, #tpu.memory_space<vmem>>, vector<64x512xf32>
    %cst = arith.constant dense<0.000000e+00> : vector<32x512xf32>
    %6 = tpu.matmul %4, %5, %cst {dimension_numbers = #tpu.dot_dimension_numbers<[1], [0], [0], [1], [0, 0, 1, 1], [], []>} : vector<32x64xf32>, vector<64x512xf32>, vector<32x512xf32> -> vector<32x512xf32>
    %c0_5 = arith.constant 0 : index
    %c0_6 = arith.constant 0 : index
    %7 = vector.load %arg4[%c0_5, %c0_6] : memref<1x512xf32, #tpu.memory_space<vmem>>, vector<1x512xf32>
    %8 = vector.broadcast %7 : vector<1x512xf32> to vector<32x512xf32>
    %9 = arith.addf %6, %8 : vector<32x512xf32>
    %c0_7 = arith.constant 0 : index
    %c0_8 = arith.constant 0 : index
    %10 = vector.load %arg10[%c0_7, %c0_8] : memref<32x512xf32, #tpu.memory_space<vmem>>, vector<32x512xf32>
    tpu.vector_store %arg10[%c0_7, %c0_8], %9 {strides = array<i32>} : memref<32x512xf32, #tpu.memory_space<vmem>>, vector<32x512xf32>,
    %c0_9 = arith.constant 0 : index
    %c0_10 = arith.constant 0 : index
    %11 = vector.load %arg8[%c0_9, %c0_10] : memref<8x128xf32, #tpu.memory_space<vmem>>, vector<8x128xf32>
    %c0_11 = arith.constant 0 : index
    %c0_12 = arith.constant 0 : index
    %12 = vector.load %arg9[%c0_11, %c0_12] : memref<8x128xf32, #tpu.memory_space<vmem>>, vector<8x128xf32>
    %c0_i32_13 = arith.constant 0 : i32
    %c8_i32 = arith.constant 8 : i32
    %13 = arith.muli %c0_i32_13, %c8_i32 : i32
    %14 = tpu.assume_multiple %13, 8 : i32
    %15 = arith.index_cast %14 : i32 to index
    %c0_14 = arith.constant 0 : index
    %16 = vector.load %arg10[%15, %c0_14] : memref<32x512xf32, #tpu.memory_space<vmem>>, vector<8x512xf32>
    %c0_15 = arith.constant 0 : index
    %c0_16 = arith.constant 0 : index
    %17 = vector.load %arg3[%c0_15, %c0_16] : memref<128x512xf32, #tpu.memory_space<vmem>>, vector<128x512xf32>
    %cst_17 = arith.constant dense<0.000000e+00> : vector<8x512xf32>
    %18 = tpu.matmul %11, %17, %cst_17 {dimension_numbers = #tpu.dot_dimension_numbers<[1], [0], [0], [1], [0, 0, 1, 1], [], []>} : vector<8x128xf32>, vector<128x512xf32>, vector<8x512xf32> -> vector<8x512xf32>
    %19 = arith.addf %16, %18 : vector<8x512xf32>
    %20 = vector.extract_strided_slice %19 {offsets = [0, 0], sizes = [8, 128], strides = [1, 1]} : vector<8x512xf32> to vector<8x128xf32>
    %21 = arith.negf %20 : vector<8x128xf32>
    %22 = math.exp %21 : vector<8x128xf32>
    %cst_18 = arith.constant 1.000000e+00 : f32
    %23 = vector.broadcast %cst_18 : f32 to vector<8x128xf32>
    %24 = arith.addf %23, %22 : vector<8x128xf32>
    %25 = arith.divf %23, %24 : vector<8x128xf32>
    %26 = vector.extract_strided_slice %19 {offsets = [0, 128], sizes = [8, 128], strides = [1, 1]} : vector<8x512xf32> to vector<8x128xf32>
    %27 = arith.negf %26 : vector<8x128xf32>
    %28 = math.exp %27 : vector<8x128xf32>
    %cst_19 = arith.constant 1.000000e+00 : f32
    %29 = vector.broadcast %cst_19 : f32 to vector<8x128xf32>
    %30 = arith.addf %29, %28 : vector<8x128xf32>
    %31 = arith.divf %29, %30 : vector<8x128xf32>
    %32 = vector.extract_strided_slice %19 {offsets = [0, 256], sizes = [8, 128], strides = [1, 1]} : vector<8x512xf32> to vector<8x128xf32>
    %33 = math.tanh %32 : vector<8x128xf32>
    %34 = vector.extract_strided_slice %19 {offsets = [0, 384], sizes = [8, 128], strides = [1, 1]} : vector<8x512xf32> to vector<8x128xf32>
    %35 = arith.negf %34 : vector<8x128xf32>
    %36 = math.exp %35 : vector<8x128xf32>
    %cst_20 = arith.constant 1.000000e+00 : f32
    %37 = vector.broadcast %cst_20 : f32 to vector<8x128xf32>
    %38 = arith.addf %37, %36 : vector<8x128xf32>
    %39 = arith.divf %37, %38 : vector<8x128xf32>
    %40 = arith.mulf %31, %12 : vector<8x128xf32>
    %41 = arith.mulf %25, %33 : vector<8x128xf32>
    %42 = arith.addf %40, %41 : vector<8x128xf32>
    %43 = math.tanh %42 : vector<8x128xf32>
    %44 = arith.mulf %39, %43 : vector<8x128xf32>
    %c1_i32 = arith.constant 1 : i32
    %c8_i32_21 = arith.constant 8 : i32
    %45 = arith.muli %c1_i32, %c8_i32_21 : i32
    %46 = tpu.assume_multiple %45, 8 : i32
    %47 = arith.index_cast %46 : i32 to index
    %c0_22 = arith.constant 0 : index
    %48 = vector.load %arg10[%47, %c0_22] : memref<32x512xf32, #tpu.memory_space<vmem>>, vector<8x512xf32>
    %c0_23 = arith.constant 0 : index
    %c0_24 = arith.constant 0 : index
    %49 = vector.load %arg3[%c0_23, %c0_24] : memref<128x512xf32, #tpu.memory_space<vmem>>, vector<128x512xf32>
    %cst_25 = arith.constant dense<0.000000e+00> : vector<8x512xf32>
    %50 = tpu.matmul %44, %49, %cst_25 {dimension_numbers = #tpu.dot_dimension_numbers<[1], [0], [0], [1], [0, 0, 1, 1], [], []>} : vector<8x128xf32>, vector<128x512xf32>, vector<8x512xf32> -> vector<8x512xf32>
    %51 = arith.addf %48, %50 : vector<8x512xf32>
    %52 = vector.extract_strided_slice %51 {offsets = [0, 0], sizes = [8, 128], strides = [1, 1]} : vector<8x512xf32> to vector<8x128xf32>
    %53 = arith.negf %52 : vector<8x128xf32>
    %54 = math.exp %53 : vector<8x128xf32>
    %cst_26 = arith.constant 1.000000e+00 : f32
    %55 = vector.broadcast %cst_26 : f32 to vector<8x128xf32>
    %56 = arith.addf %55, %54 : vector<8x128xf32>
    %57 = arith.divf %55, %56 : vector<8x128xf32>
    %58 = vector.extract_strided_slice %51 {offsets = [0, 128], sizes = [8, 128], strides = [1, 1]} : vector<8x512xf32> to vector<8x128xf32>
    %59 = arith.negf %58 : vector<8x128xf32>
    %60 = math.exp %59 : vector<8x128xf32>
    %cst_27 = arith.constant 1.000000e+00 : f32
    %61 = vector.broadcast %cst_27 : f32 to vector<8x128xf32>
    %62 = arith.addf %61, %60 : vector<8x128xf32>
    %63 = arith.divf %61, %62 : vector<8x128xf32>
    %64 = vector.extract_strided_slice %51 {offsets = [0, 256], sizes = [8, 128], strides = [1, 1]} : vector<8x512xf32> to vector<8x128xf32>
    %65 = math.tanh %64 : vector<8x128xf32>
    %66 = vector.extract_strided_slice %51 {offsets = [0, 384], sizes = [8, 128], strides = [1, 1]} : vector<8x512xf32> to vector<8x128xf32>
    %67 = arith.negf %66 : vector<8x128xf32>
    %68 = math.exp %67 : vector<8x128xf32>
    %cst_28 = arith.constant 1.000000e+00 : f32
    %69 = vector.broadcast %cst_28 : f32 to vector<8x128xf32>
    %70 = arith.addf %69, %68 : vector<8x128xf32>
    %71 = arith.divf %69, %70 : vector<8x128xf32>
    %72 = arith.mulf %63, %42 : vector<8x128xf32>
    %73 = arith.mulf %57, %65 : vector<8x128xf32>
    %74 = arith.addf %72, %73 : vector<8x128xf32>
    %75 = math.tanh %74 : vector<8x128xf32>
    %76 = arith.mulf %71, %75 : vector<8x128xf32>
    %c2_i32 = arith.constant 2 : i32
    %c8_i32_29 = arith.constant 8 : i32
    %77 = arith.muli %c2_i32, %c8_i32_29 : i32
    %78 = tpu.assume_multiple %77, 8 : i32
    %79 = arith.index_cast %78 : i32 to index
    %c0_30 = arith.constant 0 : index
    %80 = vector.load %arg10[%79, %c0_30] : memref<32x512xf32, #tpu.memory_space<vmem>>, vector<8x512xf32>
    %c0_31 = arith.constant 0 : index
    %c0_32 = arith.constant 0 : index
    %81 = vector.load %arg3[%c0_31, %c0_32] : memref<128x512xf32, #tpu.memory_space<vmem>>, vector<128x512xf32>
    %cst_33 = arith.constant dense<0.000000e+00> : vector<8x512xf32>
    %82 = tpu.matmul %76, %81, %cst_33 {dimension_numbers = #tpu.dot_dimension_numbers<[1], [0], [0], [1], [0, 0, 1, 1], [], []>} : vector<8x128xf32>, vector<128x512xf32>, vector<8x512xf32> -> vector<8x512xf32>
    %83 = arith.addf %80, %82 : vector<8x512xf32>
    %84 = vector.extract_strided_slice %83 {offsets = [0, 0], sizes = [8, 128], strides = [1, 1]} : vector<8x512xf32> to vector<8x128xf32>
    %85 = arith.negf %84 : vector<8x128xf32>
    %86 = math.exp %85 : vector<8x128xf32>
    %cst_34 = arith.constant 1.000000e+00 : f32
    %87 = vector.broadcast %cst_34 : f32 to vector<8x128xf32>
    %88 = arith.addf %87, %86 : vector<8x128xf32>
    %89 = arith.divf %87, %88 : vector<8x128xf32>
    %90 = vector.extract_strided_slice %83 {offsets = [0, 128], sizes = [8, 128], strides = [1, 1]} : vector<8x512xf32> to vector<8x128xf32>
    %91 = arith.negf %90 : vector<8x128xf32>
    %92 = math.exp %91 : vector<8x128xf32>
    %cst_35 = arith.constant 1.000000e+00 : f32
    %93 = vector.broadcast %cst_35 : f32 to vector<8x128xf32>
    %94 = arith.addf %93, %92 : vector<8x128xf32>
    %95 = arith.divf %93, %94 : vector<8x128xf32>
    %96 = vector.extract_strided_slice %83 {offsets = [0, 256], sizes = [8, 128], strides = [1, 1]} : vector<8x512xf32> to vector<8x128xf32>
    %97 = math.tanh %96 : vector<8x128xf32>
    %98 = vector.extract_strided_slice %83 {offsets = [0, 384], sizes = [8, 128], strides = [1, 1]} : vector<8x512xf32> to vector<8x128xf32>
    %99 = arith.negf %98 : vector<8x128xf32>
    %100 = math.exp %99 : vector<8x128xf32>
    %cst_36 = arith.constant 1.000000e+00 : f32
    %101 = vector.broadcast %cst_36 : f32 to vector<8x128xf32>
    %102 = arith.addf %101, %100 : vector<8x128xf32>
    %103 = arith.divf %101, %102 : vector<8x128xf32>
    %104 = arith.mulf %95, %74 : vector<8x128xf32>
    %105 = arith.mulf %89, %97 : vector<8x128xf32>
    %106 = arith.addf %104, %105 : vector<8x128xf32>
    %107 = math.tanh %106 : vector<8x128xf32>
    %108 = arith.mulf %103, %107 : vector<8x128xf32>
    %c3_i32 = arith.constant 3 : i32
    %c8_i32_37 = arith.constant 8 : i32
    %109 = arith.muli %c3_i32, %c8_i32_37 : i32
    %110 = tpu.assume_multiple %109, 8 : i32
    %111 = arith.index_cast %110 : i32 to index
    %c0_38 = arith.constant 0 : index
    %112 = vector.load %arg10[%111, %c0_38] : memref<32x512xf32, #tpu.memory_space<vmem>>, vector<8x512xf32>
    %c0_39 = arith.constant 0 : index
    %c0_40 = arith.constant 0 : index
    %113 = vector.load %arg3[%c0_39, %c0_40] : memref<128x512xf32, #tpu.memory_space<vmem>>, vector<128x512xf32>
    %cst_41 = arith.constant dense<0.000000e+00> : vector<8x512xf32>
    %114 = tpu.matmul %108, %113, %cst_41 {dimension_numbers = #tpu.dot_dimension_numbers<[1], [0], [0], [1], [0, 0, 1, 1], [], []>} : vector<8x128xf32>, vector<128x512xf32>, vector<8x512xf32> -> vector<8x512xf32>
    %115 = arith.addf %112, %114 : vector<8x512xf32>
    %116 = vector.extract_strided_slice %115 {offsets = [0, 0], sizes = [8, 128], strides = [1, 1]} : vector<8x512xf32> to vector<8x128xf32>
    %117 = arith.negf %116 : vector<8x128xf32>
    %118 = math.exp %117 : vector<8x128xf32>
    %cst_42 = arith.constant 1.000000e+00 : f32
    %119 = vector.broadcast %cst_42 : f32 to vector<8x128xf32>
    %120 = arith.addf %119, %118 : vector<8x128xf32>
    %121 = arith.divf %119, %120 : vector<8x128xf32>
    %122 = vector.extract_strided_slice %115 {offsets = [0, 128], sizes = [8, 128], strides = [1, 1]} : vector<8x512xf32> to vector<8x128xf32>
    %123 = arith.negf %122 : vector<8x128xf32>
    %124 = math.exp %123 : vector<8x128xf32>
    %cst_43 = arith.constant 1.000000e+00 : f32
    %125 = vector.broadcast %cst_43 : f32 to vector<8x128xf32>
    %126 = arith.addf %125, %124 : vector<8x128xf32>
    %127 = arith.divf %125, %126 : vector<8x128xf32>
    %128 = vector.extract_strided_slice %115 {offsets = [0, 256], sizes = [8, 128], strides = [1, 1]} : vector<8x512xf32> to vector<8x128xf32>
    %129 = math.tanh %128 : vector<8x128xf32>
    %130 = vector.extract_strided_slice %115 {offsets = [0, 384], sizes = [8, 128], strides = [1, 1]} : vector<8x512xf32> to vector<8x128xf32>
    %131 = arith.negf %130 : vector<8x128xf32>
    %132 = math.exp %131 : vector<8x128xf32>
    %cst_44 = arith.constant 1.000000e+00 : f32
    %133 = vector.broadcast %cst_44 : f32 to vector<8x128xf32>
    %134 = arith.addf %133, %132 : vector<8x128xf32>
    %135 = arith.divf %133, %134 : vector<8x128xf32>
    %136 = arith.mulf %127, %106 : vector<8x128xf32>
    %137 = arith.mulf %121, %129 : vector<8x128xf32>
    %138 = arith.addf %136, %137 : vector<8x128xf32>
    %139 = math.tanh %138 : vector<8x128xf32>
    %140 = arith.mulf %135, %139 : vector<8x128xf32>
    %c4_i32 = arith.constant 4 : i32
    %c0_45 = arith.constant 0 : index
    %c0_46 = arith.constant 0 : index
    %141 = vector.load %arg8[%c0_45, %c0_46] : memref<8x128xf32, #tpu.memory_space<vmem>>, vector<8x128xf32>
    tpu.vector_store %arg8[%c0_45, %c0_46], %140 {strides = array<i32>} : memref<8x128xf32, #tpu.memory_space<vmem>>, vector<8x128xf32>,
    %c0_47 = arith.constant 0 : index
    %c0_48 = arith.constant 0 : index
    %142 = vector.load %arg9[%c0_47, %c0_48] : memref<8x128xf32, #tpu.memory_space<vmem>>, vector<8x128xf32>
    tpu.vector_store %arg9[%c0_47, %c0_48], %138 {strides = array<i32>} : memref<8x128xf32, #tpu.memory_space<vmem>>, vector<8x128xf32>,
    %c1_i32_49 = arith.constant 1 : i32
    %143 = arith.cmpi eq, %arg0, %c1_i32_49 : i32
    %144 = arith.extui %143 : i1 to i32
    %c0_i32_50 = arith.constant 0 : i32
    %145 = arith.cmpi ne, %144, %c0_i32_50 : i32
    scf.if %145 {
      %c0_51 = arith.constant 0 : index
      %c0_52 = arith.constant 0 : index
      %146 = vector.load %arg5[%c0_51, %c0_52] : memref<128x2xf32, #tpu.memory_space<vmem>>, vector<128x2xf32>
      %cst_53 = arith.constant dense<0.000000e+00> : vector<8x2xf32>
      %147 = tpu.matmul %140, %146, %cst_53 {dimension_numbers = #tpu.dot_dimension_numbers<[1], [0], [0], [1], [0, 0, 1, 1], [], []>} : vector<8x128xf32>, vector<128x2xf32>, vector<8x2xf32> -> vector<8x2xf32>
      %c0_54 = arith.constant 0 : index
      %c0_55 = arith.constant 0 : index
      %148 = vector.load %arg6[%c0_54, %c0_55] : memref<1x2xf32, #tpu.memory_space<vmem>>, vector<1x2xf32>
      %149 = vector.broadcast %148 : vector<1x2xf32> to vector<8x2xf32>
      %150 = arith.addf %147, %149 : vector<8x2xf32>
      %c0_56 = arith.constant 0 : index
      %c0_57 = arith.constant 0 : index
      %151 = vector.load %arg7[%c0_56, %c0_57] : memref<8x2xf32, #tpu.memory_space<vmem>>, vector<8x2xf32>
      tpu.vector_store %arg7[%c0_56, %c0_57], %150 {strides = array<i32>} : memref<8x2xf32, #tpu.memory_space<vmem>>, vector<8x2xf32>,
    } else {
    }
    return
  }
  func.func @transform_0(%arg0: i32) -> (i32, i32, i32) {
    %c0_i32 = arith.constant 0 : i32
    %c0_i32_0 = arith.constant 0 : i32
    %c0_i32_1 = arith.constant 0 : i32
    return %arg0, %c0_i32, %c0_i32_0 : i32, i32, i32
  }
  func.func @transform_1(%arg0: i32) -> (i32, i32) {
    %c0_i32 = arith.constant 0 : i32
    %c0_i32_0 = arith.constant 0 : i32
    %c0_i32_1 = arith.constant 0 : i32
    return %c0_i32, %c0_i32_0 : i32, i32
  }
  func.func @transform_2(%arg0: i32) -> (i32, i32) {
    %c0_i32 = arith.constant 0 : i32
    %c0_i32_0 = arith.constant 0 : i32
    %c0_i32_1 = arith.constant 0 : i32
    return %c0_i32, %c0_i32_0 : i32, i32
  }
  func.func @transform_3(%arg0: i32) -> (i32, i32) {
    %c0_i32 = arith.constant 0 : i32
    %c0_i32_0 = arith.constant 0 : i32
    %c0_i32_1 = arith.constant 0 : i32
    return %c0_i32, %c0_i32_0 : i32, i32
  }
  func.func @transform_4(%arg0: i32) -> (i32, i32) {
    %c0_i32 = arith.constant 0 : i32
    %c0_i32_0 = arith.constant 0 : i32
    %c0_i32_1 = arith.constant 0 : i32
    return %c0_i32, %c0_i32_0 : i32, i32
  }
  func.func @transform_5(%arg0: i32) -> (i32, i32) {
    %c0_i32 = arith.constant 0 : i32
    %c0_i32_0 = arith.constant 0 : i32
    %c0_i32_1 = arith.constant 0 : i32
    return %c0_i32, %c0_i32_0 : i32, i32
  }
  func.func @transform_6(%arg0: i32) -> (i32, i32) {
    %c0_i32 = arith.constant 0 : i32
    %c0_i32_0 = arith.constant 0 : i32
    %c0_i32_1 = arith.constant 0 : i32
    return %c0_i32, %c0_i32_0 : i32, i32
  }
}

</mosaic_0001>

<llo_original>
// kernel: tpu_custom_call.1
$region0: #{tpu_custom_call.1}
  #allocation0 [shape = 'u32[]', space=smem, size = 0x4, offset = 0x4, fixed_abs, tag = 'smem constant byte address 0x4 - core index']
  #allocation1 [shape = 'u32[144,128]{1,0:T(1,128)}', space=vmem, size = 0x12000, scoped, tag = 'internal scratch']
  #allocation2 [shape = 'f32[8,128]{1,0:T(8,128)}', space=vmem, size = 0x1000, scoped, tag = 'scratch operand']
  #allocation3 [shape = 'f32[8,128]{1,0:T(8,128)}', space=vmem, size = 0x1000, scoped, tag = 'scratch operand']
  #allocation4 [shape = 'f32[32,512]{1,0:T(8,128)}', space=vmem, size = 0x10000, scoped, tag = 'scratch operand']
  %s0 = inlined_call_operand.vmem [shape: f32[2,32,64], index: 0, kind: input, shape index: {}]
  %s1 = inlined_call_operand.hbm [shape: f32[64,512], index: 1, kind: input, shape index: {}]
  %s2 = inlined_call_operand.hbm [shape: f32[128,512], index: 2, kind: input, shape index: {}]
  %s3 = inlined_call_operand.vmem [shape: f32[1,512], index: 3, kind: input, shape index: {}]
  %s4 = inlined_call_operand.vmem [shape: f32[128,2], index: 4, kind: input, shape index: {}]
  %s5 = inlined_call_operand.vmem [shape: f32[1,2], index: 5, kind: input, shape index: {}]
  %s6 = inlined_call_operand.vmem [shape: f32[8,2], index: 6, kind: output, shape index: {}]
  %s7 = sld [smem:[#allocation0]]
  $region73: #{tpu_custom_call.1} parent=0
    _
  %s9 = ssub.s32 1, %s7
  %s10 = scalar_select 0, %s9, %s7
  $region1: #{tpu_custom_call.1} parent=0
    #allocation5 [shape = 'u8[131072]{0}', space=vmem, size = 0x20000, scoped, tag = 'input window, operand 1, single buffered']
    #allocation6 [shape = 's32[2]{0}', space=sflag, size = 0x8, scoped, tag = 'scoped memory for tpu_custom_call.1']
    #allocation7 [shape = 'u8[262144]{0}', space=vmem, size = 0x40000, scoped, tag = 'input window, operand 2, single buffered']
    #allocation8 [shape = 's32[1]{0}', space=sflag, size = 0x4, scoped, tag = 'scoped memory for tpu_custom_call.1']
    %11 = vsyncpa [#allocation6], 0
    %12 = vsyncpa [#allocation8], 0
    loop: start=0, step=1, limit=4
    $region2: #{tpu_custom_call.1} parent=1 // loop_pre_header
      _
    $region3: #{tpu_custom_call.1} parent=1 // loop_header
      %s14 = sphi 0, %s18
      %p15 = scmp.ge.s32.totalorder %s14, 4
      %s24 = sphi 0, %s26
      %s27 = sphi 0, %s24
      %s28 = sphi 0, %s27
      %s44 = sphi 0, %s28
      %s48 = sphi 0, %s48
      %s50 = sphi 0, %s48
      %s51 = sphi 0, %s50
      %s65 = sphi 0, %s51
      %s69 = sphi 0, %s69
      %s71 = sphi 0, %s69
      %s72 = sphi 0, %s71
      %s86 = sphi 0, %s72
      %s90 = sphi 0, %s90
      %s92 = sphi 0, %s90
      %s93 = sphi 0, %s92
      %s107 = sphi 0, %s93
      %s111 = sphi 0, %s111
      %s113 = sphi 0, %s111
      %s114 = sphi 0, %s113
      %s128 = sphi 0, %s114
      %s132 = sphi 0, %s132
      %s134 = sphi 0, %s132
      %s135 = sphi 0, %s134
      %s149 = sphi 0, %s135
      %s153 = sphi 0, %s153
      %s155 = sphi 0, %s153
      %s156 = sphi 0, %s155
      %s170 = sphi 0, %s156
    $region4: #{tpu_custom_call.1} parent=1 // loop_header_branch
      %17 = sbr.rel (%p15) target = $region8
    $region5: #{tpu_custom_call.1} parent=1 // loop_body
      %s19 = ssub.s32 %s14, 1
      %s20 = ssub.s32 %s14, 2
      %s21 = sadd.s32 %s14, 1
      %s22 = ssub.s32 %s14, %s21
      %p23 = scmp.eq.s32.totalorder %s22, 0
      %s25 = sadd.s32 %s24, 1
      %s26 = scalar_select %p23, %s24, %s25
      %p29 = pneg %p23
      %p30 = scmp.eq.s32.totalorder %s14, 1
      %p31 = por %p29, %p30
      %p32 = scmp.ne.s32.totalorder %s24, %s27
      %p33 = scmp.eq.s32.totalorder %s14, 0
      %p34 = por %p32, %p33
      %p35 = scmp.ne.s32.totalorder %s24, %s27
      %p36 = scmp.eq.s32.totalorder %s19, 1
      %p37 = por %p35, %p36
      %p38 = scmp.ne.s32.totalorder %s27, %s28
      %p39 = scmp.eq.s32.totalorder %s19, 0
      %p40 = por %p38, %p39
      %p41 = scmp.ne.s32.totalorder %s27, %s28
      %p42 = scmp.eq.s32.totalorder %s20, 1
      %p43 = por %p41, %p42
      %p45 = scmp.ne.s32.totalorder %s28, %s44
      %p46 = scmp.eq.s32.totalorder %s20, 0
      %p47 = por %p45, %p46
      %s49 = sadd.s32 %s48, 1
      %p52 = scmp.eq.s32.totalorder %s14, 1
      %p53 = scmp.ne.s32.totalorder %s48, %s50
      %p54 = scmp.eq.s32.totalorder %s14, 0
      %p55 = por %p53, %p54
      %p56 = scmp.ne.s32.totalorder %s48, %s50
      %p57 = scmp.eq.s32.totalorder %s19, 1
      %p58 = por %p56, %p57
      %p59 = scmp.ne.s32.totalorder %s50, %s51
      %p60 = scmp.eq.s32.totalorder %s19, 0
      %p61 = por %p59, %p60
      %p62 = scmp.ne.s32.totalorder %s50, %s51
      %p63 = scmp.eq.s32.totalorder %s20, 1
      %p64 = por %p62, %p63
      %p66 = scmp.ne.s32.totalorder %s51, %s65
      %p67 = scmp.eq.s32.totalorder %s20, 0
      %p68 = por %p66, %p67
      %s70 = sadd.s32 %s69, 1
      %p73 = scmp.eq.s32.totalorder %s14, 1
      %p74 = scmp.ne.s32.totalorder %s69, %s71
      %p75 = scmp.eq.s32.totalorder %s14, 0
      %p76 = por %p74, %p75
      %p77 = scmp.ne.s32.totalorder %s69, %s71
      %p78 = scmp.eq.s32.totalorder %s19, 1
      %p79 = por %p77, %p78
      %p80 = scmp.ne.s32.totalorder %s71, %s72
      %p81 = scmp.eq.s32.totalorder %s19, 0
      %p82 = por %p80, %p81
      %p83 = scmp.ne.s32.totalorder %s71, %s72
      %p84 = scmp.eq.s32.totalorder %s20, 1
      %p85 = por %p83, %p84
      %p87 = scmp.ne.s32.totalorder %s72, %s86
      %p88 = scmp.eq.s32.totalorder %s20, 0
      %p89 = por %p87, %p88
      %s91 = sadd.s32 %s90, 1
      %p94 = scmp.eq.s32.totalorder %s14, 1
      %p95 = scmp.ne.s32.totalorder %s90, %s92
      %p96 = scmp.eq.s32.totalorder %s14, 0
      %p97 = por %p95, %p96
      %p98 = scmp.ne.s32.totalorder %s90, %s92
      %p99 = scmp.eq.s32.totalorder %s19, 1
      %p100 = por %p98, %p99
      %p101 = scmp.ne.s32.totalorder %s92, %s93
      %p102 = scmp.eq.s32.totalorder %s19, 0
      %p103 = por %p101, %p102
      %p104 = scmp.ne.s32.totalorder %s92, %s93
      %p105 = scmp.eq.s32.totalorder %s20, 1
      %p106 = por %p104, %p105
      %p108 = scmp.ne.s32.totalorder %s93, %s107
      %p109 = scmp.eq.s32.totalorder %s20, 0
      %p110 = por %p108, %p109
      %s112 = sadd.s32 %s111, 1
      %p115 = scmp.eq.s32.totalorder %s14, 1
      %p116 = scmp.ne.s32.totalorder %s111, %s113
      %p117 = scmp.eq.s32.totalorder %s14, 0
      %p118 = por %p116, %p117
      %p119 = scmp.ne.s32.totalorder %s111, %s113
      %p120 = scmp.eq.s32.totalorder %s19, 1
      %p121 = por %p119, %p120
      %p122 = scmp.ne.s32.totalorder %s113, %s114
      %p123 = scmp.eq.s32.totalorder %s19, 0
      %p124 = por %p122, %p123
      %p125 = scmp.ne.s32.totalorder %s113, %s114
      %p126 = scmp.eq.s32.totalorder %s20, 1
      %p127 = por %p125, %p126
      %p129 = scmp.ne.s32.totalorder %s114, %s128
      %p130 = scmp.eq.s32.totalorder %s20, 0
      %p131 = por %p129, %p130
      %s133 = sadd.s32 %s132, 1
      %p136 = scmp.eq.s32.totalorder %s14, 1
      %p137 = scmp.ne.s32.totalorder %s132, %s134
      %p138 = scmp.eq.s32.totalorder %s14, 0
      %p139 = por %p137, %p138
      %p140 = scmp.ne.s32.totalorder %s132, %s134
      %p141 = scmp.eq.s32.totalorder %s19, 1
      %p142 = por %p140, %p141
      %p143 = scmp.ne.s32.totalorder %s134, %s135
      %p144 = scmp.eq.s32.totalorder %s19, 0
      %p145 = por %p143, %p144
      %p146 = scmp.ne.s32.totalorder %s134, %s135
      %p147 = scmp.eq.s32.totalorder %s20, 1
      %p148 = por %p146, %p147
      %p150 = scmp.ne.s32.totalorder %s135, %s149
      %p151 = scmp.eq.s32.totalorder %s20, 0
      %p152 = por %p150, %p151
      %s154 = sadd.s32 %s153, 1
      %p157 = scmp.eq.s32.totalorder %s14, 1
      %p158 = scmp.ne.s32.totalorder %s153, %s155
      %p159 = scmp.eq.s32.totalorder %s14, 0
      %p160 = por %p158, %p159
      %p161 = scmp.ne.s32.totalorder %s153, %s155
      %p162 = scmp.eq.s32.totalorder %s19, 1
      %p163 = por %p161, %p162
      %p164 = scmp.ne.s32.totalorder %s155, %s156
      %p165 = scmp.eq.s32.totalorder %s19, 0
      %p166 = por %p164, %p165
      %p167 = scmp.ne.s32.totalorder %s155, %s156
      %p168 = scmp.eq.s32.totalorder %s20, 1
      %p169 = por %p167, %p168
      %p171 = scmp.ne.s32.totalorder %s156, %s170
      %p172 = scmp.eq.s32.totalorder %s20, 0
      %p173 = por %p171, %p172
      %p174 = scmp.le.s32.totalorder 1, %s14
      %p175 = scmp.lt.s32.totalorder %s14, 3
      %p176 = pnand %p174, %p175
      %p177 = pneg %p176
      // Predicated region
      $region9: #{tpu_custom_call.1} parent=5 // pred_check
        _
      $region10: #{tpu_custom_call.1} parent=5 // pred_check_branch
        %179 = sbr.rel (%p176) target = $region12
      $region11: #{tpu_custom_call.1} parent=5 // pred_region
        %s180 = ssub.s32 %s14, 1
        // Predicated region
        $region13: #{tpu_custom_call.1} parent=11 // pred_check
          %p181 = pneg %p61
        $region14: #{tpu_custom_call.1} parent=11 // pred_check_branch
          %183 = sbr.rel (%p181) target = $region16
        $region15: #{tpu_custom_call.1} parent=11 // pred_region
          %s185 = ssub.s32 4096, 4096
          %186 = vsyncadd [#allocation6], %s185
          %s187 = sshll.u32 [#allocation5], 4
          %s188 = int_to_ptr.vmem [resolvable:$true] %s187
          %193 = dma.hbm_to_vmem [thread:$0]  %s1, 4096, %s188, [#allocation6], 512, 512, 32
        $region16: #{tpu_custom_call.1} parent=11 // pred_fallthru
          _
        // Predicated region
        $region17: #{tpu_custom_call.1} parent=11 // pred_check
          %p194 = pneg %p82
        $region18: #{tpu_custom_call.1} parent=11 // pred_check_branch
          %196 = sbr.rel (%p194) target = $region20
        $region19: #{tpu_custom_call.1} parent=11 // pred_region
          %s198 = ssub.s32 8192, 8192
          %199 = vsyncadd [#allocation8], %s198
          %s200 = sshll.u32 [#allocation7], 4
          %s201 = int_to_ptr.vmem [resolvable:$true] %s200
          %206 = dma.hbm_to_vmem [thread:$0]  %s2, 8192, %s201, [#allocation8], 512, 512, 32
        $region20: #{tpu_custom_call.1} parent=11 // pred_fallthru
          _
        // Predicated region
        $region21: #{tpu_custom_call.1} parent=11 // pred_check
          %p207 = pneg %p103
        $region22: #{tpu_custom_call.1} parent=11 // pred_check_branch
          %209 = sbr.rel (%p207) target = $region24
        $region23: #{tpu_custom_call.1} parent=11 // pred_region
          _
        $region24: #{tpu_custom_call.1} parent=11 // pred_fallthru
          _
        // Predicated region
        $region25: #{tpu_custom_call.1} parent=11 // pred_check
          %p210 = pneg %p124
        $region26: #{tpu_custom_call.1} parent=11 // pred_check_branch
          %212 = sbr.rel (%p210) target = $region28
        $region27: #{tpu_custom_call.1} parent=11 // pred_region
          _
        $region28: #{tpu_custom_call.1} parent=11 // pred_fallthru
          _
        // Predicated region
        $region29: #{tpu_custom_call.1} parent=11 // pred_check
          %p213 = pneg %p145
        $region30: #{tpu_custom_call.1} parent=11 // pred_check_branch
          %215 = sbr.rel (%p213) target = $region32
        $region31: #{tpu_custom_call.1} parent=11 // pred_region
          _
        $region32: #{tpu_custom_call.1} parent=11 // pred_fallthru
          _
      $region12: #{tpu_custom_call.1} parent=5 // pred_fallthru
        _
      %p216 = scmp.lt.s32.totalorder %s14, 2
      // Predicated region
      $region33: #{tpu_custom_call.1} parent=5 // pred_check
        %p217 = pneg %p216
      $region34: #{tpu_custom_call.1} parent=5 // pred_check_branch
        %219 = sbr.rel (%p217) target = $region36
      $region35: #{tpu_custom_call.1} parent=5 // pred_region
        // Predicated region
        $region37: #{tpu_custom_call.1} parent=35 // pred_check
          %p220 = pneg %p34
        $region38: #{tpu_custom_call.1} parent=35 // pred_check_branch
          %222 = sbr.rel (%p220) target = $region40
        $region39: #{tpu_custom_call.1} parent=35 // pred_region
          %p223 = scmp.lt.s32.totalorder %s14, 1
          %s224 = scalar_select %p223, %s14, 1
          %s225 = smul.addr %s224, 4
          %s226 = smul.addr %s225, 8
          %s227 = scalar_lea.vmem %s0, %s226
        $region40: #{tpu_custom_call.1} parent=35 // pred_fallthru
          _
      $region36: #{tpu_custom_call.1} parent=5 // pred_fallthru
        _
      %p228 = scmp.le.s32.totalorder 1, %s14
      %p229 = scmp.lt.s32.totalorder %s14, 3
      %p230 = pnand %p228, %p229
      %p231 = pneg %p230
      // Predicated region
      $region41: #{tpu_custom_call.1} parent=5 // pred_check
        _
      $region42: #{tpu_custom_call.1} parent=5 // pred_check_branch
        %233 = sbr.rel (%p230) target = $region44
      $region43: #{tpu_custom_call.1} parent=5 // pred_region
        %s234 = ssub.s32 %s14, 1
        // Predicated region
        $region45: #{tpu_custom_call.1} parent=43 // pred_check
          %p235 = pneg %p61
        $region46: #{tpu_custom_call.1} parent=43 // pred_check_branch
          %237 = sbr.rel (%p235) target = $region48
        $region47: #{tpu_custom_call.1} parent=43 // pred_region
          %238 = dma.done [#allocation6], 4096
        $region48: #{tpu_custom_call.1} parent=43 // pred_fallthru
          _
        // Predicated region
        $region49: #{tpu_custom_call.1} parent=43 // pred_check
          %p239 = pneg %p82
        $region50: #{tpu_custom_call.1} parent=43 // pred_check_branch
          %241 = sbr.rel (%p239) target = $region52
        $region51: #{tpu_custom_call.1} parent=43 // pred_region
          %242 = dma.done [#allocation8], 8192
        $region52: #{tpu_custom_call.1} parent=43 // pred_fallthru
          _
        %p243 = scmp.lt.s32.totalorder %s19, 1
        %s244 = scalar_select %p243, %s19, 1
        %s245 = smul.addr %s244, 4
        %s246 = smul.addr %s245, 8
        %s247 = scalar_lea.vmem %s0, %s246
        %p248 = pneg %p40
        %p249 = pneg %p37
        %p250 = pneg %p61
        %p251 = pneg %p58
        %p252 = pneg %p82
        %p253 = pneg %p79
        %p254 = pneg %p103
        %p255 = pneg %p100
        %p256 = pneg %p124
        %p257 = pneg %p121
        %p258 = pneg %p145
        %p259 = pneg %p142
        %p260 = pneg %p166
        %p261 = pneg %p163
        %p262 = scmp.lt.s32.totalorder %s19, 1
        %s263 = scalar_select %p262, %s19, 1
        %s264 = smul.addr %s263, 4
        %s265 = smul.addr %s264, 8
        %s266 = scalar_lea.vmem %s0, %s265
        %p267 = scmp.eq.s32.totalorder %s19, 0
        // Predicated region
        $region53: #{tpu_custom_call.1} parent=43 // pred_check
          %p268 = pneg %p267
        $region54: #{tpu_custom_call.1} parent=43 // pred_check_branch
          %270 = sbr.rel (%p268) target = $region56
        $region55: #{tpu_custom_call.1} parent=43 // pred_region
          %271 = vst [vmem:[#allocation2] sm:$0xff] 0.0
          %272 = vst [vmem:[#allocation3] sm:$0xff] 0.0
        $region56: #{tpu_custom_call.1} parent=43 // pred_fallthru
          _
        %v273 = vld [vmem:[%s266] sm:$0xff]
        %v274 = vld [vmem:[%s266 + $0x8] sm:$0xff]
        %v275 = vld [vmem:[%s266 + $0x10] sm:$0xff]
        %v276 = vld [vmem:[%s266 + $0x18] sm:$0xff]
        %v277 = vld [vmem:[#allocation5] sm:$0xff]
        %v278 = vld [vmem:[#allocation5 + $0x8] sm:$0xff]
        %v279 = vld [vmem:[#allocation5 + $0x10] sm:$0xff]
        %v280 = vld [vmem:[#allocation5 + $0x18] sm:$0xff]
        %v281 = vld [vmem:[#allocation5 + $0x20] sm:$0xff]
        %v282 = vld [vmem:[#allocation5 + $0x28] sm:$0xff]
        %v283 = vld [vmem:[#allocation5 + $0x30] sm:$0xff]
        %v284 = vld [vmem:[#allocation5 + $0x38] sm:$0xff]
        %v285 = vld [vmem:[#allocation5 + $0x40] sm:$0xff]
        %v286 = vld [vmem:[#allocation5 + $0x48] sm:$0xff]
        %v287 = vld [vmem:[#allocation5 + $0x50] sm:$0xff]
        %v288 = vld [vmem:[#allocation5 + $0x58] sm:$0xff]
        %v289 = vld [vmem:[#allocation5 + $0x60] sm:$0xff]
        %v290 = vld [vmem:[#allocation5 + $0x68] sm:$0xff]
        %v291 = vld [vmem:[#allocation5 + $0x70] sm:$0xff]
        %v292 = vld [vmem:[#allocation5 + $0x78] sm:$0xff]
        %v293 = vld [vmem:[#allocation5 + $0x80] sm:$0xff]
        %v294 = vld [vmem:[#allocation5 + $0x88] sm:$0xff]
        %v295 = vld [vmem:[#allocation5 + $0x90] sm:$0xff]
        %v296 = vld [vmem:[#allocation5 + $0x98] sm:$0xff]
        %v297 = vld [vmem:[#allocation5 + $0xa0] sm:$0xff]
        %v298 = vld [vmem:[#allocation5 + $0xa8] sm:$0xff]
        %v299 = vld [vmem:[#allocation5 + $0xb0] sm:$0xff]
        %v300 = vld [vmem:[#allocation5 + $0xb8] sm:$0xff]
        %v301 = vld [vmem:[#allocation5 + $0xc0] sm:$0xff]
        %v302 = vld [vmem:[#allocation5 + $0xc8] sm:$0xff]
        %v303 = vld [vmem:[#allocation5 + $0xd0] sm:$0xff]
        %v304 = vld [vmem:[#allocation5 + $0xd8] sm:$0xff]
        %v305 = vld [vmem:[#allocation5 + $0xe0] sm:$0xff]
        %v306 = vld [vmem:[#allocation5 + $0xe8] sm:$0xff]
        %v307 = vld [vmem:[#allocation5 + $0xf0] sm:$0xff]
        %v308 = vld [vmem:[#allocation5 + $0xf8] sm:$0xff]
        %v309 = vld [vmem:[%s3] sm:$0xf]
        %v311 = vlaneseq
        %v312 = vshrl.u32 %v311, 7
        %v313 = vsub.s32 0, %v312
        %v314 = vrot.slane %v309, %v313
        %v315 = vlaneseq
        %v316 = vshrl.u32 %v315, 7
        %v317 = vsub.s32 1, %v316
        %v318 = vrot.slane %v309, %v317
        %v319 = vlaneseq
        %v320 = vshrl.u32 %v319, 7
        %v321 = vsub.s32 2, %v320
        %v322 = vrot.slane %v309, %v321
        %v323 = vlaneseq
        %v324 = vshrl.u32 %v323, 7
        %v325 = vsub.s32 3, %v324
        %v326 = vrot.slane %v309, %v325
        %vm331 = vcmask 523264
        %v333 = vsel %vm331, %v273, 0
        %v336 = vsel %vm331, %v274, 0
        %v339 = vsel %vm331, %v275, 0
        %v342 = vsel %vm331, %v276, 0
        %344 = vmatprep.subr.mxu0 0.0
        %345 = vmatpush1.msra.mxu0 0.0
        %346 = vmatprep.subr.mxu0 0.0
        %347 = vmatpush1.msra.mxu0 0.0
        %348 = vmatprep.subr.mxu0 0.0
        %349 = vmatpush1.msra.mxu0 0.0
        %350 = vmatprep.subr.mxu0 0.0
        %351 = vmatpush1.msra.mxu0 0.0
        %352 = vmatprep.subr.mxu0 0.0
        %353 = vmatpush1.msra.mxu0 0.0
        %354 = vmatprep.subr.mxu0 0.0
        %355 = vmatpush1.msra.mxu0 0.0
        %356 = vmatprep.subr.mxu0 0.0
        %357 = vmatpush1.msra.mxu0 0.0
        %358 = vmatprep.subr.mxu0 0.0
        %359 = vmatpush1.msra.mxu0 0.0
        %360 = vmatprep.subr.mxu0 %v306
        %361 = vmatpush1.msra.mxu0 %v305
        %362 = vmatprep.subr.mxu0 %v302
        %363 = vmatpush1.msra.mxu0 %v301
        %364 = vmatprep.subr.mxu0 %v298
        %365 = vmatpush1.msra.mxu0 %v297
        %366 = vmatprep.subr.mxu0 %v294
        %367 = vmatpush1.msra.mxu0 %v293
        %368 = vmatprep.subr.mxu0 %v290
        %369 = vmatpush1.msra.mxu0 %v289
        %370 = vmatprep.subr.mxu0 %v286
        %371 = vmatpush1.msra.mxu0 %v285
        %372 = vmatprep.subr.mxu0 %v282
        %373 = vmatpush1.msra.mxu0 %v281
        %374 = vmatprep.subr.mxu0 %v278
        %375 = vmatpush1.msra.mxu0 %v277
        %376 = vmatprep.subr.mxu0 0.0
        %377 = vmatpush2.msra.mxu0 0.0
        %378 = vmatprep.subr.mxu0 0.0
        %379 = vmatpush2.msra.mxu0 0.0
        %380 = vmatprep.subr.mxu0 0.0
        %381 = vmatpush2.msra.mxu0 0.0
        %382 = vmatprep.subr.mxu0 0.0
        %383 = vmatpush2.msra.mxu0 0.0
        %384 = vmatprep.subr.mxu0 0.0
        %385 = vmatpush2.msra.mxu0 0.0
        %386 = vmatprep.subr.mxu0 0.0
        %387 = vmatpush2.msra.mxu0 0.0
        %388 = vmatprep.subr.mxu0 0.0
        %389 = vmatpush2.msra.mxu0 0.0
        %390 = vmatprep.subr.mxu0 0.0
        %391 = vmatpush2.msra.mxu0 0.0
        %392 = vmatprep.subr.mxu0 0.0
        %393 = vmatpush2.msra.mxu0 0.0
        %394 = vmatprep.subr.mxu0 0.0
        %395 = vmatpush2.msra.mxu0 0.0
        %396 = vmatprep.subr.mxu0 0.0
        %397 = vmatpush2.msra.mxu0 0.0
        %398 = vmatprep.subr.mxu0 0.0
        %399 = vmatpush2.msra.mxu0 0.0
        %400 = vmatprep.subr.mxu0 0.0
        %401 = vmatpush2.msra.mxu0 0.0
        %402 = vmatprep.subr.mxu0 0.0
        %403 = vmatpush2.msra.mxu0 0.0
        %404 = vmatprep.subr.mxu0 0.0
        %405 = vmatpush2.msra.mxu0 0.0
        %406 = vmatprep.subr.mxu0 0.0
        %407 = vmatpush2.msra.mxu0 0.0
        %408 = vmatprep.mubr.f32.mxu0 0.0
        %409 = vmatmul.mubr.f32.gmra.mxu0 %v333
        %v410 = vpop.f32.mrf.mxu0
        %v411 = vadd.f32 %v314, %v410
        %v412 = vpop.f32.mrf.mxu0
        %v413 = vadd.f32 %v318, %v412
        %414 = vmatprep.mubr.f32.mxu0 0.0
        %415 = vmatmul.mubr.f32.gmra.mxu0 %v336
        %v416 = vpop.f32.mrf.mxu0
        %v417 = vadd.f32 %v314, %v416
        %v418 = vpop.f32.mrf.mxu0
        %v419 = vadd.f32 %v318, %v418
        %420 = vmatprep.mubr.f32.mxu0 0.0
        %421 = vmatmul.mubr.f32.gmra.mxu0 %v339
        %v422 = vpop.f32.mrf.mxu0
        %v423 = vadd.f32 %v314, %v422
        %v424 = vpop.f32.mrf.mxu0
        %v425 = vadd.f32 %v318, %v424
        %426 = vmatprep.mubr.f32.mxu0 0.0
        %427 = vmatmul.mubr.f32.gmra.mxu0 %v342
        %v428 = vpop.f32.mrf.mxu0
        %v429 = vadd.f32 %v314, %v428
        %v430 = vpop.f32.mrf.mxu0
        %v431 = vadd.f32 %v318, %v430
        %432 = vdwg.mxu0
        %433 = vmatprep.subr.mxu0 0.0
        %434 = vmatpush1.msra.mxu0 0.0
        %435 = vmatprep.subr.mxu0 0.0
        %436 = vmatpush1.msra.mxu0 0.0
        %437 = vmatprep.subr.mxu0 0.0
        %438 = vmatpush1.msra.mxu0 0.0
        %439 = vmatprep.subr.mxu0 0.0
        %440 = vmatpush1.msra.mxu0 0.0
        %441 = vmatprep.subr.mxu0 0.0
        %442 = vmatpush1.msra.mxu0 0.0
        %443 = vmatprep.subr.mxu0 0.0
        %444 = vmatpush1.msra.mxu0 0.0
        %445 = vmatprep.subr.mxu0 0.0
        %446 = vmatpush1.msra.mxu0 0.0
        %447 = vmatprep.subr.mxu0 0.0
        %448 = vmatpush1.msra.mxu0 0.0
        %449 = vmatprep.subr.mxu0 %v308
        %450 = vmatpush1.msra.mxu0 %v307
        %451 = vmatprep.subr.mxu0 %v304
        %452 = vmatpush1.msra.mxu0 %v303
        %453 = vmatprep.subr.mxu0 %v300
        %454 = vmatpush1.msra.mxu0 %v299
        %455 = vmatprep.subr.mxu0 %v296
        %456 = vmatpush1.msra.mxu0 %v295
        %457 = vmatprep.subr.mxu0 %v292
        %458 = vmatpush1.msra.mxu0 %v291
        %459 = vmatprep.subr.mxu0 %v288
        %460 = vmatpush1.msra.mxu0 %v287
        %461 = vmatprep.subr.mxu0 %v284
        %462 = vmatpush1.msra.mxu0 %v283
        %463 = vmatprep.subr.mxu0 %v280
        %464 = vmatpush1.msra.mxu0 %v279
        %465 = vmatprep.subr.mxu0 0.0
        %466 = vmatpush2.msra.mxu0 0.0
        %467 = vmatprep.subr.mxu0 0.0
        %468 = vmatpush2.msra.mxu0 0.0
        %469 = vmatprep.subr.mxu0 0.0
        %470 = vmatpush2.msra.mxu0 0.0
        %471 = vmatprep.subr.mxu0 0.0
        %472 = vmatpush2.msra.mxu0 0.0
        %473 = vmatprep.subr.mxu0 0.0
        %474 = vmatpush2.msra.mxu0 0.0
        %475 = vmatprep.subr.mxu0 0.0
        %476 = vmatpush2.msra.mxu0 0.0
        %477 = vmatprep.subr.mxu0 0.0
        %478 = vmatpush2.msra.mxu0 0.0
        %479 = vmatprep.subr.mxu0 0.0
        %480 = vmatpush2.msra.mxu0 0.0
        %481 = vmatprep.subr.mxu0 0.0
        %482 = vmatpush2.msra.mxu0 0.0
        %483 = vmatprep.subr.mxu0 0.0
        %484 = vmatpush2.msra.mxu0 0.0
        %485 = vmatprep.subr.mxu0 0.0
        %486 = vmatpush2.msra.mxu0 0.0
        %487 = vmatprep.subr.mxu0 0.0
        %488 = vmatpush2.msra.mxu0 0.0
        %489 = vmatprep.subr.mxu0 0.0
        %490 = vmatpush2.msra.mxu0 0.0
        %491 = vmatprep.subr.mxu0 0.0
        %492 = vmatpush2.msra.mxu0 0.0
        %493 = vmatprep.subr.mxu0 0.0
        %494 = vmatpush2.msra.mxu0 0.0
        %495 = vmatprep.subr.mxu0 0.0
        %496 = vmatpush2.msra.mxu0 0.0
        %497 = vmatprep.mubr.f32.mxu0 0.0
        %498 = vmatmul.mubr.f32.gmra.mxu0 %v333
        %v499 = vpop.f32.mrf.mxu0
        %v500 = vadd.f32 %v322, %v499
        %v501 = vpop.f32.mrf.mxu0
        %v502 = vadd.f32 %v326, %v501
        %503 = vmatprep.mubr.f32.mxu0 0.0
        %504 = vmatmul.mubr.f32.gmra.mxu0 %v336
        %v505 = vpop.f32.mrf.mxu0
        %v506 = vadd.f32 %v322, %v505
        %v507 = vpop.f32.mrf.mxu0
        %v508 = vadd.f32 %v326, %v507
        %509 = vmatprep.mubr.f32.mxu0 0.0
        %510 = vmatmul.mubr.f32.gmra.mxu0 %v339
        %v511 = vpop.f32.mrf.mxu0
        %v512 = vadd.f32 %v322, %v511
        %v513 = vpop.f32.mrf.mxu0
        %v514 = vadd.f32 %v326, %v513
        %515 = vmatprep.mubr.f32.mxu0 0.0
        %516 = vmatmul.mubr.f32.gmra.mxu0 %v342
        %v517 = vpop.f32.mrf.mxu0
        %v518 = vadd.f32 %v322, %v517
        %v519 = vpop.f32.mrf.mxu0
        %v520 = vadd.f32 %v326, %v519
        %521 = vdwg.mxu0
        %522 = vst [vmem:[#allocation4] sm:$0xff] %v411
        %523 = vst [vmem:[#allocation4 + $0x8] sm:$0xff] %v413
        %524 = vst [vmem:[#allocation4 + $0x10] sm:$0xff] %v500
        %525 = vst [vmem:[#allocation4 + $0x18] sm:$0xff] %v502
        %526 = vst [vmem:[#allocation4 + $0x20] sm:$0xff] %v417
        %527 = vst [vmem:[#allocation4 + $0x28] sm:$0xff] %v419
        %528 = vst [vmem:[#allocation4 + $0x30] sm:$0xff] %v506
        %529 = vst [vmem:[#allocation4 + $0x38] sm:$0xff] %v508
        %530 = vst [vmem:[#allocation4 + $0x40] sm:$0xff] %v423
        %531 = vst [vmem:[#allocation4 + $0x48] sm:$0xff] %v425
        %532 = vst [vmem:[#allocation4 + $0x50] sm:$0xff] %v512
        %533 = vst [vmem:[#allocation4 + $0x58] sm:$0xff] %v514
        %534 = vst [vmem:[#allocation4 + $0x60] sm:$0xff] %v429
        %535 = vst [vmem:[#allocation4 + $0x68] sm:$0xff] %v431
        %536 = vst [vmem:[#allocation4 + $0x70] sm:$0xff] %v518
        %537 = vst [vmem:[#allocation4 + $0x78] sm:$0xff] %v520
        %v538 = vld [vmem:[#allocation2] sm:$0xff]
        %v539 = vld [vmem:[#allocation3] sm:$0xff]
        %s540 = smul.u32 0, 4
        %s541 = smul.addr %s540, 8
        %s542 = scalar_lea.vmem [#allocation4], %s541
        %v543 = vld [vmem:[%s542] sm:$0xff]
        %v544 = vld [vmem:[%s542 + $0x8] sm:$0xff]
        %v545 = vld [vmem:[%s542 + $0x10] sm:$0xff]
        %v546 = vld [vmem:[%s542 + $0x18] sm:$0xff]
        %v547 = vld [vmem:[#allocation7] sm:$0xff]
        %v548 = vld [vmem:[#allocation7 + $0x8] sm:$0xff]
        %v549 = vld [vmem:[#allocation7 + $0x10] sm:$0xff]
        %v550 = vld [vmem:[#allocation7 + $0x18] sm:$0xff]
        %v551 = vld [vmem:[#allocation7 + $0x20] sm:$0xff]
        %v552 = vld [vmem:[#allocation7 + $0x28] sm:$0xff]
        %v553 = vld [vmem:[#allocation7 + $0x30] sm:$0xff]
        %v554 = vld [vmem:[#allocation7 + $0x38] sm:$0xff]
        %v555 = vld [vmem:[#allocation7 + $0x40] sm:$0xff]
        %v556 = vld [vmem:[#allocation7 + $0x48] sm:$0xff]
        %v557 = vld [vmem:[#allocation7 + $0x50] sm:$0xff]
        %v558 = vld [vmem:[#allocation7 + $0x58] sm:$0xff]
        %v559 = vld [vmem:[#allocation7 + $0x60] sm:$0xff]
        %v560 = vld [vmem:[#allocation7 + $0x68] sm:$0xff]
        %v561 = vld [vmem:[#allocation7 + $0x70] sm:$0xff]
        %v562 = vld [vmem:[#allocation7 + $0x78] sm:$0xff]
        %v563 = vld [vmem:[#allocation7 + $0x80] sm:$0xff]
        %v564 = vld [vmem:[#allocation7 + $0x88] sm:$0xff]
        %v565 = vld [vmem:[#allocation7 + $0x90] sm:$0xff]
        %v566 = vld [vmem:[#allocation7 + $0x98] sm:$0xff]
        %v567 = vld [vmem:[#allocation7 + $0xa0] sm:$0xff]
        %v568 = vld [vmem:[#allocation7 + $0xa8] sm:$0xff]
        %v569 = vld [vmem:[#allocation7 + $0xb0] sm:$0xff]
        %v570 = vld [vmem:[#allocation7 + $0xb8] sm:$0xff]
        %v571 = vld [vmem:[#allocation7 + $0xc0] sm:$0xff]
        %v572 = vld [vmem:[#allocation7 + $0xc8] sm:$0xff]
        %v573 = vld [vmem:[#allocation7 + $0xd0] sm:$0xff]
        %v574 = vld [vmem:[#allocation7 + $0xd8] sm:$0xff]
        %v575 = vld [vmem:[#allocation7 + $0xe0] sm:$0xff]
        %v576 = vld [vmem:[#allocation7 + $0xe8] sm:$0xff]
        %v577 = vld [vmem:[#allocation7 + $0xf0] sm:$0xff]
        %v578 = vld [vmem:[#allocation7 + $0xf8] sm:$0xff]
        %v579 = vld [vmem:[#allocation7 + $0x100] sm:$0xff]
        %v580 = vld [vmem:[#allocation7 + $0x108] sm:$0xff]
        %v581 = vld [vmem:[#allocation7 + $0x110] sm:$0xff]
        %v582 = vld [vmem:[#allocation7 + $0x118] sm:$0xff]
        %v583 = vld [vmem:[#allocation7 + $0x120] sm:$0xff]
        %v584 = vld [vmem:[#allocation7 + $0x128] sm:$0xff]
        %v585 = vld [vmem:[#allocation7 + $0x130] sm:$0xff]
        %v586 = vld [vmem:[#allocation7 + $0x138] sm:$0xff]
        %v587 = vld [vmem:[#allocation7 + $0x140] sm:$0xff]
        %v588 = vld [vmem:[#allocation7 + $0x148] sm:$0xff]
        %v589 = vld [vmem:[#allocation7 + $0x150] sm:$0xff]
        %v590 = vld [vmem:[#allocation7 + $0x158] sm:$0xff]
        %v591 = vld [vmem:[#allocation7 + $0x160] sm:$0xff]
        %v592 = vld [vmem:[#allocation7 + $0x168] sm:$0xff]
        %v593 = vld [vmem:[#allocation7 + $0x170] sm:$0xff]
        %v594 = vld [vmem:[#allocation7 + $0x178] sm:$0xff]
        %v595 = vld [vmem:[#allocation7 + $0x180] sm:$0xff]
        %v596 = vld [vmem:[#allocation7 + $0x188] sm:$0xff]
        %v597 = vld [vmem:[#allocation7 + $0x190] sm:$0xff]
        %v598 = vld [vmem:[#allocation7 + $0x198] sm:$0xff]
        %v599 = vld [vmem:[#allocation7 + $0x1a0] sm:$0xff]
        %v600 = vld [vmem:[#allocation7 + $0x1a8] sm:$0xff]
        %v601 = vld [vmem:[#allocation7 + $0x1b0] sm:$0xff]
        %v602 = vld [vmem:[#allocation7 + $0x1b8] sm:$0xff]
        %v603 = vld [vmem:[#allocation7 + $0x1c0] sm:$0xff]
        %v604 = vld [vmem:[#allocation7 + $0x1c8] sm:$0xff]
        %v605 = vld [vmem:[#allocation7 + $0x1d0] sm:$0xff]
        %v606 = vld [vmem:[#allocation7 + $0x1d8] sm:$0xff]
        %v607 = vld [vmem:[#allocation7 + $0x1e0] sm:$0xff]
        %v608 = vld [vmem:[#allocation7 + $0x1e8] sm:$0xff]
        %v609 = vld [vmem:[#allocation7 + $0x1f0] sm:$0xff]
        %v610 = vld [vmem:[#allocation7 + $0x1f8] sm:$0xff]
        %611 = vmatprep.subr.mxu0 %v608
        %612 = vmatpush1.msra.mxu0 %v607
        %613 = vmatprep.subr.mxu0 %v604
        %614 = vmatpush1.msra.mxu0 %v603
        %615 = vmatprep.subr.mxu0 %v600
        %616 = vmatpush1.msra.mxu0 %v599
        %617 = vmatprep.subr.mxu0 %v596
        %618 = vmatpush1.msra.mxu0 %v595
        %619 = vmatprep.subr.mxu0 %v592
        %620 = vmatpush1.msra.mxu0 %v591
        %621 = vmatprep.subr.mxu0 %v588
        %622 = vmatpush1.msra.mxu0 %v587
        %623 = vmatprep.subr.mxu0 %v584
        %624 = vmatpush1.msra.mxu0 %v583
        %625 = vmatprep.subr.mxu0 %v580
        %626 = vmatpush1.msra.mxu0 %v579
        %627 = vmatprep.subr.mxu0 %v576
        %628 = vmatpush1.msra.mxu0 %v575
        %629 = vmatprep.subr.mxu0 %v572
        %630 = vmatpush1.msra.mxu0 %v571
        %631 = vmatprep.subr.mxu0 %v568
        %632 = vmatpush1.msra.mxu0 %v567
        %633 = vmatprep.subr.mxu0 %v564
        %634 = vmatpush1.msra.mxu0 %v563
        %635 = vmatprep.subr.mxu0 %v560
        %636 = vmatpush1.msra.mxu0 %v559
        %637 = vmatprep.subr.mxu0 %v556
        %638 = vmatpush1.msra.mxu0 %v555
        %639 = vmatprep.subr.mxu0 %v552
        %640 = vmatpush1.msra.mxu0 %v551
        %641 = vmatprep.subr.mxu0 %v548
        %642 = vmatpush1.msra.mxu0 %v547
        %643 = vmatprep.subr.mxu0 0.0
        %644 = vmatpush2.msra.mxu0 0.0
        %645 = vmatprep.subr.mxu0 0.0
        %646 = vmatpush2.msra.mxu0 0.0
        %647 = vmatprep.subr.mxu0 0.0
        %648 = vmatpush2.msra.mxu0 0.0
        %649 = vmatprep.subr.mxu0 0.0
        %650 = vmatpush2.msra.mxu0 0.0
        %651 = vmatprep.subr.mxu0 0.0
        %652 = vmatpush2.msra.mxu0 0.0
        %653 = vmatprep.subr.mxu0 0.0
        %654 = vmatpush2.msra.mxu0 0.0
        %655 = vmatprep.subr.mxu0 0.0
        %656 = vmatpush2.msra.mxu0 0.0
        %657 = vmatprep.subr.mxu0 0.0
        %658 = vmatpush2.msra.mxu0 0.0
        %659 = vmatprep.subr.mxu0 0.0
        %660 = vmatpush2.msra.mxu0 0.0
        %661 = vmatprep.subr.mxu0 0.0
        %662 = vmatpush2.msra.mxu0 0.0
        %663 = vmatprep.subr.mxu0 0.0
        %664 = vmatpush2.msra.mxu0 0.0
        %665 = vmatprep.subr.mxu0 0.0
        %666 = vmatpush2.msra.mxu0 0.0
        %667 = vmatprep.subr.mxu0 0.0
        %668 = vmatpush2.msra.mxu0 0.0
        %669 = vmatprep.subr.mxu0 0.0
        %670 = vmatpush2.msra.mxu0 0.0
        %671 = vmatprep.subr.mxu0 0.0
        %672 = vmatpush2.msra.mxu0 0.0
        %673 = vmatprep.subr.mxu0 0.0
        %674 = vmatpush2.msra.mxu0 0.0
        %675 = vmatprep.mubr.f32.mxu0 0.0
        %676 = vmatmul.mubr.f32.gmra.mxu0 %v538
        %v677 = vpop.f32.mrf.mxu0
        %v678 = vadd.f32 0.0, %v677
        %v679 = vpop.f32.mrf.mxu0
        %v680 = vadd.f32 0.0, %v679
        %681 = vdwg.mxu0
        %682 = vmatprep.subr.mxu0 %v610
        %683 = vmatpush1.msra.mxu0 %v609
        %684 = vmatprep.subr.mxu0 %v606
        %685 = vmatpush1.msra.mxu0 %v605
        %686 = vmatprep.subr.mxu0 %v602
        %687 = vmatpush1.msra.mxu0 %v601
        %688 = vmatprep.subr.mxu0 %v598
        %689 = vmatpush1.msra.mxu0 %v597
        %690 = vmatprep.subr.mxu0 %v594
        %691 = vmatpush1.msra.mxu0 %v593
        %692 = vmatprep.subr.mxu0 %v590
        %693 = vmatpush1.msra.mxu0 %v589
        %694 = vmatprep.subr.mxu0 %v586
        %695 = vmatpush1.msra.mxu0 %v585
        %696 = vmatprep.subr.mxu0 %v582
        %697 = vmatpush1.msra.mxu0 %v581
        %698 = vmatprep.subr.mxu0 %v578
        %699 = vmatpush1.msra.mxu0 %v577
        %700 = vmatprep.subr.mxu0 %v574
        %701 = vmatpush1.msra.mxu0 %v573
        %702 = vmatprep.subr.mxu0 %v570
        %703 = vmatpush1.msra.mxu0 %v569
        %704 = vmatprep.subr.mxu0 %v566
        %705 = vmatpush1.msra.mxu0 %v565
        %706 = vmatprep.subr.mxu0 %v562
        %707 = vmatpush1.msra.mxu0 %v561
        %708 = vmatprep.subr.mxu0 %v558
        %709 = vmatpush1.msra.mxu0 %v557
        %710 = vmatprep.subr.mxu0 %v554
        %711 = vmatpush1.msra.mxu0 %v553
        %712 = vmatprep.subr.mxu0 %v550
        %713 = vmatpush1.msra.mxu0 %v549
        %714 = vmatprep.subr.mxu0 0.0
        %715 = vmatpush2.msra.mxu0 0.0
        %716 = vmatprep.subr.mxu0 0.0
        %717 = vmatpush2.msra.mxu0 0.0
        %718 = vmatprep.subr.mxu0 0.0
        %719 = vmatpush2.msra.mxu0 0.0
        %720 = vmatprep.subr.mxu0 0.0
        %721 = vmatpush2.msra.mxu0 0.0
        %722 = vmatprep.subr.mxu0 0.0
        %723 = vmatpush2.msra.mxu0 0.0
        %724 = vmatprep.subr.mxu0 0.0
        %725 = vmatpush2.msra.mxu0 0.0
        %726 = vmatprep.subr.mxu0 0.0
        %727 = vmatpush2.msra.mxu0 0.0
        %728 = vmatprep.subr.mxu0 0.0
        %729 = vmatpush2.msra.mxu0 0.0
        %730 = vmatprep.subr.mxu0 0.0
        %731 = vmatpush2.msra.mxu0 0.0
        %732 = vmatprep.subr.mxu0 0.0
        %733 = vmatpush2.msra.mxu0 0.0
        %734 = vmatprep.subr.mxu0 0.0
        %735 = vmatpush2.msra.mxu0 0.0
        %736 = vmatprep.subr.mxu0 0.0
        %737 = vmatpush2.msra.mxu0 0.0
        %738 = vmatprep.subr.mxu0 0.0
        %739 = vmatpush2.msra.mxu0 0.0
        %740 = vmatprep.subr.mxu0 0.0
        %741 = vmatpush2.msra.mxu0 0.0
        %742 = vmatprep.subr.mxu0 0.0
        %743 = vmatpush2.msra.mxu0 0.0
        %744 = vmatprep.subr.mxu0 0.0
        %745 = vmatpush2.msra.mxu0 0.0
        %746 = vmatprep.mubr.f32.mxu0 0.0
        %747 = vmatmul.mubr.f32.gmra.mxu0 %v538
        %v748 = vpop.f32.mrf.mxu0
        %v749 = vadd.f32 0.0, %v748
        %v750 = vpop.f32.mrf.mxu0
        %v751 = vadd.f32 0.0, %v750
        %752 = vdwg.mxu0
        %v753 = vadd.f32 %v543, %v678
        %v754 = vadd.f32 %v544, %v680
        %v755 = vadd.f32 %v545, %v749
        %v756 = vadd.f32 %v546, %v751
        %v757 = vxor.u32 %v753, 2147483648
        %v758 = vmul.f32 %v757, 1.442695
        %v759 = vpow.pop %v758
        %v760 = vadd.f32 %v759, 1.0
        %v761 = vrcp.pop %v760
        %v762 = vmul.f32 1.0, %v761
        %v763 = vxor.u32 %v754, 2147483648
        %v764 = vmul.f32 %v763, 1.442695
        %v765 = vpow.pop %v764
        %v766 = vadd.f32 %v765, 1.0
        %v767 = vrcp.pop %v766
        %v768 = vmul.f32 1.0, %v767
        %v769 = vtanh.pop %v755
        %v770 = vxor.u32 %v756, 2147483648
        %v771 = vmul.f32 %v770, 1.442695
        %v772 = vpow.pop %v771
        %v773 = vadd.f32 %v772, 1.0
        %v774 = vrcp.pop %v773
        %v775 = vmul.f32 1.0, %v774
        %v776 = vmul.f32 %v768, %v539
        %v777 = vmul.f32 %v762, %v769
        %v778 = vadd.f32 %v776, %v777
        %v779 = vtanh.pop %v778
        %v780 = vmul.f32 %v775, %v779
        %s781 = smul.u32 1, 4
        %s782 = smul.addr %s781, 8
        %s783 = scalar_lea.vmem [#allocation4], %s782
        %v784 = vld [vmem:[%s783] sm:$0xff]
        %v785 = vld [vmem:[%s783 + $0x8] sm:$0xff]
        %v786 = vld [vmem:[%s783 + $0x10] sm:$0xff]
        %v787 = vld [vmem:[%s783 + $0x18] sm:$0xff]
        %788 = vmatprep.subr.mxu0 %v608
        %789 = vmatpush1.msra.mxu0 %v607
        %790 = vmatprep.subr.mxu0 %v604
        %791 = vmatpush1.msra.mxu0 %v603
        %792 = vmatprep.subr.mxu0 %v600
        %793 = vmatpush1.msra.mxu0 %v599
        %794 = vmatprep.subr.mxu0 %v596
        %795 = vmatpush1.msra.mxu0 %v595
        %796 = vmatprep.subr.mxu0 %v592
        %797 = vmatpush1.msra.mxu0 %v591
        %798 = vmatprep.subr.mxu0 %v588
        %799 = vmatpush1.msra.mxu0 %v587
        %800 = vmatprep.subr.mxu0 %v584
        %801 = vmatpush1.msra.mxu0 %v583
        %802 = vmatprep.subr.mxu0 %v580
        %803 = vmatpush1.msra.mxu0 %v579
        %804 = vmatprep.subr.mxu0 %v576
        %805 = vmatpush1.msra.mxu0 %v575
        %806 = vmatprep.subr.mxu0 %v572
        %807 = vmatpush1.msra.mxu0 %v571
        %808 = vmatprep.subr.mxu0 %v568
        %809 = vmatpush1.msra.mxu0 %v567
        %810 = vmatprep.subr.mxu0 %v564
        %811 = vmatpush1.msra.mxu0 %v563
        %812 = vmatprep.subr.mxu0 %v560
        %813 = vmatpush1.msra.mxu0 %v559
        %814 = vmatprep.subr.mxu0 %v556
        %815 = vmatpush1.msra.mxu0 %v555
        %816 = vmatprep.subr.mxu0 %v552
        %817 = vmatpush1.msra.mxu0 %v551
        %818 = vmatprep.subr.mxu0 %v548
        %819 = vmatpush1.msra.mxu0 %v547
        %820 = vmatprep.subr.mxu0 0.0
        %821 = vmatpush2.msra.mxu0 0.0
        %822 = vmatprep.subr.mxu0 0.0
        %823 = vmatpush2.msra.mxu0 0.0
        %824 = vmatprep.subr.mxu0 0.0
        %825 = vmatpush2.msra.mxu0 0.0
        %826 = vmatprep.subr.mxu0 0.0
        %827 = vmatpush2.msra.mxu0 0.0
        %828 = vmatprep.subr.mxu0 0.0
        %829 = vmatpush2.msra.mxu0 0.0
        %830 = vmatprep.subr.mxu0 0.0
        %831 = vmatpush2.msra.mxu0 0.0
        %832 = vmatprep.subr.mxu0 0.0
        %833 = vmatpush2.msra.mxu0 0.0
        %834 = vmatprep.subr.mxu0 0.0
        %835 = vmatpush2.msra.mxu0 0.0
        %836 = vmatprep.subr.mxu0 0.0
        %837 = vmatpush2.msra.mxu0 0.0
        %838 = vmatprep.subr.mxu0 0.0
        %839 = vmatpush2.msra.mxu0 0.0
        %840 = vmatprep.subr.mxu0 0.0
        %841 = vmatpush2.msra.mxu0 0.0
        %842 = vmatprep.subr.mxu0 0.0
        %843 = vmatpush2.msra.mxu0 0.0
        %844 = vmatprep.subr.mxu0 0.0
        %845 = vmatpush2.msra.mxu0 0.0
        %846 = vmatprep.subr.mxu0 0.0
        %847 = vmatpush2.msra.mxu0 0.0
        %848 = vmatprep.subr.mxu0 0.0
        %849 = vmatpush2.msra.mxu0 0.0
        %850 = vmatprep.subr.mxu0 0.0
        %851 = vmatpush2.msra.mxu0 0.0
        %852 = vmatprep.mubr.f32.mxu0 0.0
        %853 = vmatmul.mubr.f32.gmra.mxu0 %v780
        %v854 = vpop.f32.mrf.mxu0
        %v855 = vadd.f32 0.0, %v854
        %v856 = vpop.f32.mrf.mxu0
        %v857 = vadd.f32 0.0, %v856
        %858 = vdwg.mxu0
        %859 = vmatprep.subr.mxu0 %v610
        %860 = vmatpush1.msra.mxu0 %v609
        %861 = vmatprep.subr.mxu0 %v606
        %862 = vmatpush1.msra.mxu0 %v605
        %863 = vmatprep.subr.mxu0 %v602
        %864 = vmatpush1.msra.mxu0 %v601
        %865 = vmatprep.subr.mxu0 %v598
        %866 = vmatpush1.msra.mxu0 %v597
        %867 = vmatprep.subr.mxu0 %v594
        %868 = vmatpush1.msra.mxu0 %v593
        %869 = vmatprep.subr.mxu0 %v590
        %870 = vmatpush1.msra.mxu0 %v589
        %871 = vmatprep.subr.mxu0 %v586
        %872 = vmatpush1.msra.mxu0 %v585
        %873 = vmatprep.subr.mxu0 %v582
        %874 = vmatpush1.msra.mxu0 %v581
        %875 = vmatprep.subr.mxu0 %v578
        %876 = vmatpush1.msra.mxu0 %v577
        %877 = vmatprep.subr.mxu0 %v574
        %878 = vmatpush1.msra.mxu0 %v573
        %879 = vmatprep.subr.mxu0 %v570
        %880 = vmatpush1.msra.mxu0 %v569
        %881 = vmatprep.subr.mxu0 %v566
        %882 = vmatpush1.msra.mxu0 %v565
        %883 = vmatprep.subr.mxu0 %v562
        %884 = vmatpush1.msra.mxu0 %v561
        %885 = vmatprep.subr.mxu0 %v558
        %886 = vmatpush1.msra.mxu0 %v557
        %887 = vmatprep.subr.mxu0 %v554
        %888 = vmatpush1.msra.mxu0 %v553
        %889 = vmatprep.subr.mxu0 %v550
        %890 = vmatpush1.msra.mxu0 %v549
        %891 = vmatprep.subr.mxu0 0.0
        %892 = vmatpush2.msra.mxu0 0.0
        %893 = vmatprep.subr.mxu0 0.0
        %894 = vmatpush2.msra.mxu0 0.0
        %895 = vmatprep.subr.mxu0 0.0
        %896 = vmatpush2.msra.mxu0 0.0
        %897 = vmatprep.subr.mxu0 0.0
        %898 = vmatpush2.msra.mxu0 0.0
        %899 = vmatprep.subr.mxu0 0.0
        %900 = vmatpush2.msra.mxu0 0.0
        %901 = vmatprep.subr.mxu0 0.0
        %902 = vmatpush2.msra.mxu0 0.0
        %903 = vmatprep.subr.mxu0 0.0
        %904 = vmatpush2.msra.mxu0 0.0
        %905 = vmatprep.subr.mxu0 0.0
        %906 = vmatpush2.msra.mxu0 0.0
        %907 = vmatprep.subr.mxu0 0.0
        %908 = vmatpush2.msra.mxu0 0.0
        %909 = vmatprep.subr.mxu0 0.0
        %910 = vmatpush2.msra.mxu0 0.0
        %911 = vmatprep.subr.mxu0 0.0
        %912 = vmatpush2.msra.mxu0 0.0
        %913 = vmatprep.subr.mxu0 0.0
        %914 = vmatpush2.msra.mxu0 0.0
        %915 = vmatprep.subr.mxu0 0.0
        %916 = vmatpush2.msra.mxu0 0.0
        %917 = vmatprep.subr.mxu0 0.0
        %918 = vmatpush2.msra.mxu0 0.0
        %919 = vmatprep.subr.mxu0 0.0
        %920 = vmatpush2.msra.mxu0 0.0
        %921 = vmatprep.subr.mxu0 0.0
        %922 = vmatpush2.msra.mxu0 0.0
        %923 = vmatprep.mubr.f32.mxu0 0.0
        %924 = vmatmul.mubr.f32.gmra.mxu0 %v780
        %v925 = vpop.f32.mrf.mxu0
        %v926 = vadd.f32 0.0, %v925
        %v927 = vpop.f32.mrf.mxu0
        %v928 = vadd.f32 0.0, %v927
        %929 = vdwg.mxu0
        %v930 = vadd.f32 %v784, %v855
        %v931 = vadd.f32 %v785, %v857
        %v932 = vadd.f32 %v786, %v926
        %v933 = vadd.f32 %v787, %v928
        %v934 = vxor.u32 %v930, 2147483648
        %v935 = vmul.f32 %v934, 1.442695
        %v936 = vpow.pop %v935
        %v937 = vadd.f32 %v936, 1.0
        %v938 = vrcp.pop %v937
        %v939 = vmul.f32 1.0, %v938
        %v940 = vxor.u32 %v931, 2147483648
        %v941 = vmul.f32 %v940, 1.442695
        %v942 = vpow.pop %v941
        %v943 = vadd.f32 %v942, 1.0
        %v944 = vrcp.pop %v943
        %v945 = vmul.f32 1.0, %v944
        %v946 = vtanh.pop %v932
        %v947 = vxor.u32 %v933, 2147483648
        %v948 = vmul.f32 %v947, 1.442695
        %v949 = vpow.pop %v948
        %v950 = vadd.f32 %v949, 1.0
        %v951 = vrcp.pop %v950
        %v952 = vmul.f32 1.0, %v951
        %v953 = vmul.f32 %v945, %v778
        %v954 = vmul.f32 %v939, %v946
        %v955 = vadd.f32 %v953, %v954
        %v956 = vtanh.pop %v955
        %v957 = vmul.f32 %v952, %v956
        %s958 = smul.u32 2, 4
        %s959 = smul.addr %s958, 8
        %s960 = scalar_lea.vmem [#allocation4], %s959
        %v961 = vld [vmem:[%s960] sm:$0xff]
        %v962 = vld [vmem:[%s960 + $0x8] sm:$0xff]
        %v963 = vld [vmem:[%s960 + $0x10] sm:$0xff]
        %v964 = vld [vmem:[%s960 + $0x18] sm:$0xff]
        %965 = vmatprep.subr.mxu0 %v608
        %966 = vmatpush1.msra.mxu0 %v607
        %967 = vmatprep.subr.mxu0 %v604
        %968 = vmatpush1.msra.mxu0 %v603
        %969 = vmatprep.subr.mxu0 %v600
        %970 = vmatpush1.msra.mxu0 %v599
        %971 = vmatprep.subr.mxu0 %v596
        %972 = vmatpush1.msra.mxu0 %v595
        %973 = vmatprep.subr.mxu0 %v592
        %974 = vmatpush1.msra.mxu0 %v591
        %975 = vmatprep.subr.mxu0 %v588
        %976 = vmatpush1.msra.mxu0 %v587
        %977 = vmatprep.subr.mxu0 %v584
        %978 = vmatpush1.msra.mxu0 %v583
        %979 = vmatprep.subr.mxu0 %v580
        %980 = vmatpush1.msra.mxu0 %v579
        %981 = vmatprep.subr.mxu0 %v576
        %982 = vmatpush1.msra.mxu0 %v575
        %983 = vmatprep.subr.mxu0 %v572
        %984 = vmatpush1.msra.mxu0 %v571
        %985 = vmatprep.subr.mxu0 %v568
        %986 = vmatpush1.msra.mxu0 %v567
        %987 = vmatprep.subr.mxu0 %v564
        %988 = vmatpush1.msra.mxu0 %v563
        %989 = vmatprep.subr.mxu0 %v560
        %990 = vmatpush1.msra.mxu0 %v559
        %991 = vmatprep.subr.mxu0 %v556
        %992 = vmatpush1.msra.mxu0 %v555
        %993 = vmatprep.subr.mxu0 %v552
        %994 = vmatpush1.msra.mxu0 %v551
        %995 = vmatprep.subr.mxu0 %v548
        %996 = vmatpush1.msra.mxu0 %v547
        %997 = vmatprep.subr.mxu0 0.0
        %998 = vmatpush2.msra.mxu0 0.0
        %999 = vmatprep.subr.mxu0 0.0
        %1000 = vmatpush2.msra.mxu0 0.0
        %1001 = vmatprep.subr.mxu0 0.0
        %1002 = vmatpush2.msra.mxu0 0.0
        %1003 = vmatprep.subr.mxu0 0.0
        %1004 = vmatpush2.msra.mxu0 0.0
        %1005 = vmatprep.subr.mxu0 0.0
        %1006 = vmatpush2.msra.mxu0 0.0
        %1007 = vmatprep.subr.mxu0 0.0
        %1008 = vmatpush2.msra.mxu0 0.0
        %1009 = vmatprep.subr.mxu0 0.0
        %1010 = vmatpush2.msra.mxu0 0.0
        %1011 = vmatprep.subr.mxu0 0.0
        %1012 = vmatpush2.msra.mxu0 0.0
        %1013 = vmatprep.subr.mxu0 0.0
        %1014 = vmatpush2.msra.mxu0 0.0
        %1015 = vmatprep.subr.mxu0 0.0
        %1016 = vmatpush2.msra.mxu0 0.0
        %1017 = vmatprep.subr.mxu0 0.0
        %1018 = vmatpush2.msra.mxu0 0.0
        %1019 = vmatprep.subr.mxu0 0.0
        %1020 = vmatpush2.msra.mxu0 0.0
        %1021 = vmatprep.subr.mxu0 0.0
        %1022 = vmatpush2.msra.mxu0 0.0
        %1023 = vmatprep.subr.mxu0 0.0
        %1024 = vmatpush2.msra.mxu0 0.0
        %1025 = vmatprep.subr.mxu0 0.0
        %1026 = vmatpush2.msra.mxu0 0.0
        %1027 = vmatprep.subr.mxu0 0.0
        %1028 = vmatpush2.msra.mxu0 0.0
        %1029 = vmatprep.mubr.f32.mxu0 0.0
        %1030 = vmatmul.mubr.f32.gmra.mxu0 %v957
        %v1031 = vpop.f32.mrf.mxu0
        %v1032 = vadd.f32 0.0, %v1031
        %v1033 = vpop.f32.mrf.mxu0
        %v1034 = vadd.f32 0.0, %v1033
        %1035 = vdwg.mxu0
        %1036 = vmatprep.subr.mxu0 %v610
        %1037 = vmatpush1.msra.mxu0 %v609
        %1038 = vmatprep.subr.mxu0 %v606
        %1039 = vmatpush1.msra.mxu0 %v605
        %1040 = vmatprep.subr.mxu0 %v602
        %1041 = vmatpush1.msra.mxu0 %v601
        %1042 = vmatprep.subr.mxu0 %v598
        %1043 = vmatpush1.msra.mxu0 %v597
        %1044 = vmatprep.subr.mxu0 %v594
        %1045 = vmatpush1.msra.mxu0 %v593
        %1046 = vmatprep.subr.mxu0 %v590
        %1047 = vmatpush1.msra.mxu0 %v589
        %1048 = vmatprep.subr.mxu0 %v586
        %1049 = vmatpush1.msra.mxu0 %v585
        %1050 = vmatprep.subr.mxu0 %v582
        %1051 = vmatpush1.msra.mxu0 %v581
        %1052 = vmatprep.subr.mxu0 %v578
        %1053 = vmatpush1.msra.mxu0 %v577
        %1054 = vmatprep.subr.mxu0 %v574
        %1055 = vmatpush1.msra.mxu0 %v573
        %1056 = vmatprep.subr.mxu0 %v570
        %1057 = vmatpush1.msra.mxu0 %v569
        %1058 = vmatprep.subr.mxu0 %v566
        %1059 = vmatpush1.msra.mxu0 %v565
        %1060 = vmatprep.subr.mxu0 %v562
        %1061 = vmatpush1.msra.mxu0 %v561
        %1062 = vmatprep.subr.mxu0 %v558
        %1063 = vmatpush1.msra.mxu0 %v557
        %1064 = vmatprep.subr.mxu0 %v554
        %1065 = vmatpush1.msra.mxu0 %v553
        %1066 = vmatprep.subr.mxu0 %v550
        %1067 = vmatpush1.msra.mxu0 %v549
        %1068 = vmatprep.subr.mxu0 0.0
        %1069 = vmatpush2.msra.mxu0 0.0
        %1070 = vmatprep.subr.mxu0 0.0
        %1071 = vmatpush2.msra.mxu0 0.0
        %1072 = vmatprep.subr.mxu0 0.0
        %1073 = vmatpush2.msra.mxu0 0.0
        %1074 = vmatprep.subr.mxu0 0.0
        %1075 = vmatpush2.msra.mxu0 0.0
        %1076 = vmatprep.subr.mxu0 0.0
        %1077 = vmatpush2.msra.mxu0 0.0
        %1078 = vmatprep.subr.mxu0 0.0
        %1079 = vmatpush2.msra.mxu0 0.0
        %1080 = vmatprep.subr.mxu0 0.0
        %1081 = vmatpush2.msra.mxu0 0.0
        %1082 = vmatprep.subr.mxu0 0.0
        %1083 = vmatpush2.msra.mxu0 0.0
        %1084 = vmatprep.subr.mxu0 0.0
        %1085 = vmatpush2.msra.mxu0 0.0
        %1086 = vmatprep.subr.mxu0 0.0
        %1087 = vmatpush2.msra.mxu0 0.0
        %1088 = vmatprep.subr.mxu0 0.0
        %1089 = vmatpush2.msra.mxu0 0.0
        %1090 = vmatprep.subr.mxu0 0.0
        %1091 = vmatpush2.msra.mxu0 0.0
        %1092 = vmatprep.subr.mxu0 0.0
        %1093 = vmatpush2.msra.mxu0 0.0
        %1094 = vmatprep.subr.mxu0 0.0
        %1095 = vmatpush2.msra.mxu0 0.0
        %1096 = vmatprep.subr.mxu0 0.0
        %1097 = vmatpush2.msra.mxu0 0.0
        %1098 = vmatprep.subr.mxu0 0.0
        %1099 = vmatpush2.msra.mxu0 0.0
        %1100 = vmatprep.mubr.f32.mxu0 0.0
        %1101 = vmatmul.mubr.f32.gmra.mxu0 %v957
        %v1102 = vpop.f32.mrf.mxu0
        %v1103 = vadd.f32 0.0, %v1102
        %v1104 = vpop.f32.mrf.mxu0
        %v1105 = vadd.f32 0.0, %v1104
        %1106 = vdwg.mxu0
        %v1107 = vadd.f32 %v961, %v1032
        %v1108 = vadd.f32 %v962, %v1034
        %v1109 = vadd.f32 %v963, %v1103
        %v1110 = vadd.f32 %v964, %v1105
        %v1111 = vxor.u32 %v1107, 2147483648
        %v1112 = vmul.f32 %v1111, 1.442695
        %v1113 = vpow.pop %v1112
        %v1114 = vadd.f32 %v1113, 1.0
        %v1115 = vrcp.pop %v1114
        %v1116 = vmul.f32 1.0, %v1115
        %v1117 = vxor.u32 %v1108, 2147483648
        %v1118 = vmul.f32 %v1117, 1.442695
        %v1119 = vpow.pop %v1118
        %v1120 = vadd.f32 %v1119, 1.0
        %v1121 = vrcp.pop %v1120
        %v1122 = vmul.f32 1.0, %v1121
        %v1123 = vtanh.pop %v1109
        %v1124 = vxor.u32 %v1110, 2147483648
        %v1125 = vmul.f32 %v1124, 1.442695
        %v1126 = vpow.pop %v1125
        %v1127 = vadd.f32 %v1126, 1.0
        %v1128 = vrcp.pop %v1127
        %v1129 = vmul.f32 1.0, %v1128
        %v1130 = vmul.f32 %v1122, %v955
        %v1131 = vmul.f32 %v1116, %v1123
        %v1132 = vadd.f32 %v1130, %v1131
        %v1133 = vtanh.pop %v1132
        %v1134 = vmul.f32 %v1129, %v1133
        %s1135 = smul.u32 3, 4
        %s1136 = smul.addr %s1135, 8
        %s1137 = scalar_lea.vmem [#allocation4], %s1136
        %v1138 = vld [vmem:[%s1137] sm:$0xff]
        %v1139 = vld [vmem:[%s1137 + $0x8] sm:$0xff]
        %v1140 = vld [vmem:[%s1137 + $0x10] sm:$0xff]
        %v1141 = vld [vmem:[%s1137 + $0x18] sm:$0xff]
        %1142 = vmatprep.subr.mxu0 %v608
        %1143 = vmatpush1.msra.mxu0 %v607
        %1144 = vmatprep.subr.mxu0 %v604
        %1145 = vmatpush1.msra.mxu0 %v603
        %1146 = vmatprep.subr.mxu0 %v600
        %1147 = vmatpush1.msra.mxu0 %v599
        %1148 = vmatprep.subr.mxu0 %v596
        %1149 = vmatpush1.msra.mxu0 %v595
        %1150 = vmatprep.subr.mxu0 %v592
        %1151 = vmatpush1.msra.mxu0 %v591
        %1152 = vmatprep.subr.mxu0 %v588
        %1153 = vmatpush1.msra.mxu0 %v587
        %1154 = vmatprep.subr.mxu0 %v584
        %1155 = vmatpush1.msra.mxu0 %v583
        %1156 = vmatprep.subr.mxu0 %v580
        %1157 = vmatpush1.msra.mxu0 %v579
        %1158 = vmatprep.subr.mxu0 %v576
        %1159 = vmatpush1.msra.mxu0 %v575
        %1160 = vmatprep.subr.mxu0 %v572
        %1161 = vmatpush1.msra.mxu0 %v571
        %1162 = vmatprep.subr.mxu0 %v568
        %1163 = vmatpush1.msra.mxu0 %v567
        %1164 = vmatprep.subr.mxu0 %v564
        %1165 = vmatpush1.msra.mxu0 %v563
        %1166 = vmatprep.subr.mxu0 %v560
        %1167 = vmatpush1.msra.mxu0 %v559
        %1168 = vmatprep.subr.mxu0 %v556
        %1169 = vmatpush1.msra.mxu0 %v555
        %1170 = vmatprep.subr.mxu0 %v552
        %1171 = vmatpush1.msra.mxu0 %v551
        %1172 = vmatprep.subr.mxu0 %v548
        %1173 = vmatpush1.msra.mxu0 %v547
        %1174 = vmatprep.subr.mxu0 0.0
        %1175 = vmatpush2.msra.mxu0 0.0
        %1176 = vmatprep.subr.mxu0 0.0
        %1177 = vmatpush2.msra.mxu0 0.0
        %1178 = vmatprep.subr.mxu0 0.0
        %1179 = vmatpush2.msra.mxu0 0.0
        %1180 = vmatprep.subr.mxu0 0.0
        %1181 = vmatpush2.msra.mxu0 0.0
        %1182 = vmatprep.subr.mxu0 0.0
        %1183 = vmatpush2.msra.mxu0 0.0
        %1184 = vmatprep.subr.mxu0 0.0
        %1185 = vmatpush2.msra.mxu0 0.0
        %1186 = vmatprep.subr.mxu0 0.0
        %1187 = vmatpush2.msra.mxu0 0.0
        %1188 = vmatprep.subr.mxu0 0.0
        %1189 = vmatpush2.msra.mxu0 0.0
        %1190 = vmatprep.subr.mxu0 0.0
        %1191 = vmatpush2.msra.mxu0 0.0
        %1192 = vmatprep.subr.mxu0 0.0
        %1193 = vmatpush2.msra.mxu0 0.0
        %1194 = vmatprep.subr.mxu0 0.0
        %1195 = vmatpush2.msra.mxu0 0.0
        %1196 = vmatprep.subr.mxu0 0.0
        %1197 = vmatpush2.msra.mxu0 0.0
        %1198 = vmatprep.subr.mxu0 0.0
        %1199 = vmatpush2.msra.mxu0 0.0
        %1200 = vmatprep.subr.mxu0 0.0
        %1201 = vmatpush2.msra.mxu0 0.0
        %1202 = vmatprep.subr.mxu0 0.0
        %1203 = vmatpush2.msra.mxu0 0.0
        %1204 = vmatprep.subr.mxu0 0.0
        %1205 = vmatpush2.msra.mxu0 0.0
        %1206 = vmatprep.mubr.f32.mxu0 0.0
        %1207 = vmatmul.mubr.f32.gmra.mxu0 %v1134
        %v1208 = vpop.f32.mrf.mxu0
        %v1209 = vadd.f32 0.0, %v1208
        %v1210 = vpop.f32.mrf.mxu0
        %v1211 = vadd.f32 0.0, %v1210
        %1212 = vdwg.mxu0
        %1213 = vmatprep.subr.mxu0 %v610
        %1214 = vmatpush1.msra.mxu0 %v609
        %1215 = vmatprep.subr.mxu0 %v606
        %1216 = vmatpush1.msra.mxu0 %v605
        %1217 = vmatprep.subr.mxu0 %v602
        %1218 = vmatpush1.msra.mxu0 %v601
        %1219 = vmatprep.subr.mxu0 %v598
        %1220 = vmatpush1.msra.mxu0 %v597
        %1221 = vmatprep.subr.mxu0 %v594
        %1222 = vmatpush1.msra.mxu0 %v593
        %1223 = vmatprep.subr.mxu0 %v590
        %1224 = vmatpush1.msra.mxu0 %v589
        %1225 = vmatprep.subr.mxu0 %v586
        %1226 = vmatpush1.msra.mxu0 %v585
        %1227 = vmatprep.subr.mxu0 %v582
        %1228 = vmatpush1.msra.mxu0 %v581
        %1229 = vmatprep.subr.mxu0 %v578
        %1230 = vmatpush1.msra.mxu0 %v577
        %1231 = vmatprep.subr.mxu0 %v574
        %1232 = vmatpush1.msra.mxu0 %v573
        %1233 = vmatprep.subr.mxu0 %v570
        %1234 = vmatpush1.msra.mxu0 %v569
        %1235 = vmatprep.subr.mxu0 %v566
        %1236 = vmatpush1.msra.mxu0 %v565
        %1237 = vmatprep.subr.mxu0 %v562
        %1238 = vmatpush1.msra.mxu0 %v561
        %1239 = vmatprep.subr.mxu0 %v558
        %1240 = vmatpush1.msra.mxu0 %v557
        %1241 = vmatprep.subr.mxu0 %v554
        %1242 = vmatpush1.msra.mxu0 %v553
        %1243 = vmatprep.subr.mxu0 %v550
        %1244 = vmatpush1.msra.mxu0 %v549
        %1245 = vmatprep.subr.mxu0 0.0
        %1246 = vmatpush2.msra.mxu0 0.0
        %1247 = vmatprep.subr.mxu0 0.0
        %1248 = vmatpush2.msra.mxu0 0.0
        %1249 = vmatprep.subr.mxu0 0.0
        %1250 = vmatpush2.msra.mxu0 0.0
        %1251 = vmatprep.subr.mxu0 0.0
        %1252 = vmatpush2.msra.mxu0 0.0
        %1253 = vmatprep.subr.mxu0 0.0
        %1254 = vmatpush2.msra.mxu0 0.0
        %1255 = vmatprep.subr.mxu0 0.0
        %1256 = vmatpush2.msra.mxu0 0.0
        %1257 = vmatprep.subr.mxu0 0.0
        %1258 = vmatpush2.msra.mxu0 0.0
        %1259 = vmatprep.subr.mxu0 0.0
        %1260 = vmatpush2.msra.mxu0 0.0
        %1261 = vmatprep.subr.mxu0 0.0
        %1262 = vmatpush2.msra.mxu0 0.0
        %1263 = vmatprep.subr.mxu0 0.0
        %1264 = vmatpush2.msra.mxu0 0.0
        %1265 = vmatprep.subr.mxu0 0.0
        %1266 = vmatpush2.msra.mxu0 0.0
        %1267 = vmatprep.subr.mxu0 0.0
        %1268 = vmatpush2.msra.mxu0 0.0
        %1269 = vmatprep.subr.mxu0 0.0
        %1270 = vmatpush2.msra.mxu0 0.0
        %1271 = vmatprep.subr.mxu0 0.0
        %1272 = vmatpush2.msra.mxu0 0.0
        %1273 = vmatprep.subr.mxu0 0.0
        %1274 = vmatpush2.msra.mxu0 0.0
        %1275 = vmatprep.subr.mxu0 0.0
        %1276 = vmatpush2.msra.mxu0 0.0
        %1277 = vmatprep.mubr.f32.mxu0 0.0
        %1278 = vmatmul.mubr.f32.gmra.mxu0 %v1134
        %v1279 = vpop.f32.mrf.mxu0
        %v1280 = vadd.f32 0.0, %v1279
        %v1281 = vpop.f32.mrf.mxu0
        %v1282 = vadd.f32 0.0, %v1281
        %1283 = vdwg.mxu0
        %v1284 = vadd.f32 %v1138, %v1209
        %v1285 = vadd.f32 %v1139, %v1211
        %v1286 = vadd.f32 %v1140, %v1280
        %v1287 = vadd.f32 %v1141, %v1282
        %v1288 = vxor.u32 %v1284, 2147483648
        %v1289 = vmul.f32 %v1288, 1.442695
        %v1290 = vpow.pop %v1289
        %v1291 = vadd.f32 %v1290, 1.0
        %v1292 = vrcp.pop %v1291
        %v1293 = vmul.f32 1.0, %v1292
        %v1294 = vxor.u32 %v1285, 2147483648
        %v1295 = vmul.f32 %v1294, 1.442695
        %v1296 = vpow.pop %v1295
        %v1297 = vadd.f32 %v1296, 1.0
        %v1298 = vrcp.pop %v1297
        %v1299 = vmul.f32 1.0, %v1298
        %v1300 = vtanh.pop %v1286
        %v1301 = vxor.u32 %v1287, 2147483648
        %v1302 = vmul.f32 %v1301, 1.442695
        %v1303 = vpow.pop %v1302
        %v1304 = vadd.f32 %v1303, 1.0
        %v1305 = vrcp.pop %v1304
        %v1306 = vmul.f32 1.0, %v1305
        %v1307 = vmul.f32 %v1299, %v1132
        %v1308 = vmul.f32 %v1293, %v1300
        %v1309 = vadd.f32 %v1307, %v1308
        %v1310 = vtanh.pop %v1309
        %v1311 = vmul.f32 %v1306, %v1310
        %1312 = vst [vmem:[#allocation2] sm:$0xff] %v1311
        %1313 = vst [vmem:[#allocation3] sm:$0xff] %v1309
        %p1314 = scmp.eq.s32.totalorder %s19, 1
        // Predicated region
        $region57: #{tpu_custom_call.1} parent=43 // pred_check
          %p1315 = pneg %p1314
        $region58: #{tpu_custom_call.1} parent=43 // pred_check_branch
          %1317 = sbr.rel (%p1315) target = $region60
        $region59: #{tpu_custom_call.1} parent=43 // pred_region
          %v1318 = vld [vmem:[%s4] sm:$0xff]
          %v1319 = vld [vmem:[%s4 + $0x8] sm:$0xff]
          %v1320 = vld [vmem:[%s4 + $0x10] sm:$0xff]
          %v1321 = vld [vmem:[%s4 + $0x18] sm:$0xff]
          %v1322 = vld [vmem:[%s4 + $0x20] sm:$0xff]
          %v1323 = vld [vmem:[%s4 + $0x28] sm:$0xff]
          %v1324 = vld [vmem:[%s4 + $0x30] sm:$0xff]
          %v1325 = vld [vmem:[%s4 + $0x38] sm:$0xff]
          %v1326 = vld [vmem:[%s4 + $0x40] sm:$0xff]
          %v1327 = vld [vmem:[%s4 + $0x48] sm:$0xff]
          %v1328 = vld [vmem:[%s4 + $0x50] sm:$0xff]
          %v1329 = vld [vmem:[%s4 + $0x58] sm:$0xff]
          %v1330 = vld [vmem:[%s4 + $0x60] sm:$0xff]
          %v1331 = vld [vmem:[%s4 + $0x68] sm:$0xff]
          %v1332 = vld [vmem:[%s4 + $0x70] sm:$0xff]
          %v1333 = vld [vmem:[%s4 + $0x78] sm:$0xff]
          %v1334 = vld [vmem:[%s5] sm:$0x1]
          %v1336 = vlaneseq
          %v1337 = vshrl.u32 %v1336, 7
          %v1338 = vsub.s32 0, %v1337
          %v1339 = vrot.slane %v1334, %v1338
          %1341 = vmatprep.subr.mxu0 0.0
          %1342 = vmatpush1.msra.mxu0 %v1333
          %1343 = vmatprep.subr.mxu0 0.0
          %1344 = vmatpush1.msra.mxu0 %v1332
          %1345 = vmatprep.subr.mxu0 0.0
          %1346 = vmatpush1.msra.mxu0 %v1331
          %1347 = vmatprep.subr.mxu0 0.0
          %1348 = vmatpush1.msra.mxu0 %v1330
          %1349 = vmatprep.subr.mxu0 0.0
          %1350 = vmatpush1.msra.mxu0 %v1329
          %1351 = vmatprep.subr.mxu0 0.0
          %1352 = vmatpush1.msra.mxu0 %v1328
          %1353 = vmatprep.subr.mxu0 0.0
          %1354 = vmatpush1.msra.mxu0 %v1327
          %1355 = vmatprep.subr.mxu0 0.0
          %1356 = vmatpush1.msra.mxu0 %v1326
          %1357 = vmatprep.subr.mxu0 0.0
          %1358 = vmatpush1.msra.mxu0 %v1325
          %1359 = vmatprep.subr.mxu0 0.0
          %1360 = vmatpush1.msra.mxu0 %v1324
          %1361 = vmatprep.subr.mxu0 0.0
          %1362 = vmatpush1.msra.mxu0 %v1323
          %1363 = vmatprep.subr.mxu0 0.0
          %1364 = vmatpush1.msra.mxu0 %v1322
          %1365 = vmatprep.subr.mxu0 0.0
          %1366 = vmatpush1.msra.mxu0 %v1321
          %1367 = vmatprep.subr.mxu0 0.0
          %1368 = vmatpush1.msra.mxu0 %v1320
          %1369 = vmatprep.subr.mxu0 0.0
          %1370 = vmatpush1.msra.mxu0 %v1319
          %1371 = vmatprep.subr.mxu0 0.0
          %1372 = vmatpush1.msra.mxu0 %v1318
          %1373 = vmatprep.subr.mxu0 0.0
          %1374 = vmatpush2.msra.mxu0 0.0
          %1375 = vmatprep.subr.mxu0 0.0
          %1376 = vmatpush2.msra.mxu0 0.0
          %1377 = vmatprep.subr.mxu0 0.0
          %1378 = vmatpush2.msra.mxu0 0.0
          %1379 = vmatprep.subr.mxu0 0.0
          %1380 = vmatpush2.msra.mxu0 0.0
          %1381 = vmatprep.subr.mxu0 0.0
          %1382 = vmatpush2.msra.mxu0 0.0
          %1383 = vmatprep.subr.mxu0 0.0
          %1384 = vmatpush2.msra.mxu0 0.0
          %1385 = vmatprep.subr.mxu0 0.0
          %1386 = vmatpush2.msra.mxu0 0.0
          %1387 = vmatprep.subr.mxu0 0.0
          %1388 = vmatpush2.msra.mxu0 0.0
          %1389 = vmatprep.subr.mxu0 0.0
          %1390 = vmatpush2.msra.mxu0 0.0
          %1391 = vmatprep.subr.mxu0 0.0
          %1392 = vmatpush2.msra.mxu0 0.0
          %1393 = vmatprep.subr.mxu0 0.0
          %1394 = vmatpush2.msra.mxu0 0.0
          %1395 = vmatprep.subr.mxu0 0.0
          %1396 = vmatpush2.msra.mxu0 0.0
          %1397 = vmatprep.subr.mxu0 0.0
          %1398 = vmatpush2.msra.mxu0 0.0
          %1399 = vmatprep.subr.mxu0 0.0
          %1400 = vmatpush2.msra.mxu0 0.0
          %1401 = vmatprep.subr.mxu0 0.0
          %1402 = vmatpush2.msra.mxu0 0.0
          %1403 = vmatprep.subr.mxu0 0.0
          %1404 = vmatpush2.msra.mxu0 0.0
          %1405 = vmatprep.mubr.f32.mxu0 0.0
          %1406 = vmatmul.mubr.f32.gmra.mxu0 %v1311
          %v1407 = vpop.f32.mrf.mxu0
          %v1408 = vadd.f32 %v1339, %v1407
          %v1409 = vpop.f32.mrf.mxu0
          %1410 = vdwg.mxu0
          %vm1411 = vcmask 15360
          %1412 = vst.msk [vmem:[%s6] sm:$0xff] %vm1411, %v1408
        $region60: #{tpu_custom_call.1} parent=43 // pred_fallthru
          _
        // Predicated region
        $region61: #{tpu_custom_call.1} parent=43 // pred_check
          %p1413 = pneg %p163
        $region62: #{tpu_custom_call.1} parent=43 // pred_check_branch
          %1415 = sbr.rel (%p1413) target = $region64
        $region63: #{tpu_custom_call.1} parent=43 // pred_region
          _
        $region64: #{tpu_custom_call.1} parent=43 // pred_fallthru
          _
        // Predicated region
        $region65: #{tpu_custom_call.1} parent=43 // pred_check
          %p1416 = pneg %p163
        $region66: #{tpu_custom_call.1} parent=43 // pred_check_branch
          %1418 = sbr.rel (%p1416) target = $region68
        $region67: #{tpu_custom_call.1} parent=43 // pred_region
          _
        $region68: #{tpu_custom_call.1} parent=43 // pred_fallthru
          _
      $region44: #{tpu_custom_call.1} parent=5 // pred_fallthru
        _
      %p1419 = scmp.le.s32.totalorder 2, %s14
      // Predicated region
      $region69: #{tpu_custom_call.1} parent=5 // pred_check
        %p1420 = pneg %p1419
      $region70: #{tpu_custom_call.1} parent=5 // pred_check_branch
        %1422 = sbr.rel (%p1420) target = $region72
      $region71: #{tpu_custom_call.1} parent=5 // pred_region
        %s1423 = ssub.s32 %s14, 2
      $region72: #{tpu_custom_call.1} parent=5 // pred_fallthru
        _
    $region6: #{tpu_custom_call.1} parent=1 // loop_footer
      %s18 = sadd.s32 1, %s14
    $region7: #{tpu_custom_call.1} parent=1 // loop_footer_branch
      %13 = sbr.rel target = $region3
    $region8: #{tpu_custom_call.1} parent=1 // loop_exit
      _
    %1424 = vsyncpa [#allocation6], 1
    %s1425 = scalar_lea.sflag [#allocation6], 1
    %1426 = vsyncpa %s1425, 1
    %1427 = vsyncpa [#allocation8], 1

</llo_original>
